<compile_context>
chip_gen: v7x
topology: tpu7x:2x2x1
jax: 0.10.0
libtpu: 0.0.40
codegen_flags: <defaults>
</compile_context>

<pallas_src>
import functools

import numpy as np
import jax
import jax.numpy as jnp
from jax.experimental import pallas as pl
from jax.experimental.pallas import tpu as pltpu


# ---------------------------------------------------------------------------
# Fused Pallas kernel: both group matmuls + on-chip relayout + bias + 6-way sum
# + leaky_relu + residual, per batch element, entirely in VMEM.
# ---------------------------------------------------------------------------
def _block3d_kernel(x_ref, q_ref, bq_ref, pt_ref, bp_ref, o_ref):
    # x_ref : (1, C, M, P)  with M = D*H*W, P = pd*ph*pw  (natural layout of x[b])
    # q_ref : (C*M, C*M)    image-group map (acts on (c,d,h,w), identity on patch axes)
    # bq_ref: (C*M, 1)
    # pt_ref: (C*P, C*P)    patch-group map, pre-transposed (acts on (c,pd,ph,pw))
    # bp_ref: (1, C*P)
    C, M, P = x_ref.shape[1], x_ref.shape[2], x_ref.shape[3]

    # ---- image group: natural layout, left matmul --------------------------------
    # rows = (c, d, h, w), cols = (pd, ph, pw); reshape is a cheap leading-dim merge.
    x1 = x_ref[...].reshape(C * M, P)
    s = jnp.dot(q_ref[...], x1, preferred_element_type=jnp.float32) + bq_ref[...]

    # ---- patch group: on-chip relayout to rows=(d,h,w), cols=(c,pd,ph,pw) ---------
    slabs = [x_ref[0, c, :, :] for c in range(C)]          # each (M, P), VMEM reads
    xp = jnp.concatenate(slabs, axis=-1)                   # (M, C*P), c-major columns
    z = jnp.dot(xp, pt_ref[...], preferred_element_type=jnp.float32) + bp_ref[...]

    # ---- 6-way sum + leaky_relu + residual, written back in the original layout ---
    for c in range(C):
        y = z[:, c * P:(c + 1) * P] + s[c * M:(c + 1) * M, :]
        y = jnp.where(y > 0, y, 0.01 * y)                  # F.leaky_relu, slope 0.01
        o_ref[0, c, :, :] = (slabs[c] + y).astype(o_ref.dtype)


# ---------------------------------------------------------------------------
# Block3d forward: one pallas_call gridded over B, wrapper reshapes are bitcasts
# ---------------------------------------------------------------------------
def block3d_forward(x, fused):
    B, C, D, H, W, pd, ph, pw = x.shape
    M, P = D * H * W, pd * ph * pw
    Fq, Fp = C * M, C * P

    x4 = x.reshape(B, C, M, P)          # contiguous reshape -> no HBM data movement

    flops = int(B * (2 * Fq * Fq * P + 2 * M * Fp * Fp + 6 * C * M * P))
    bytes_accessed = int(4 * (2 * B * C * M * P + Fq * Fq + Fp * Fp + Fq + Fp))
    # weights/biases (double-buffer worst case) + in/out blocks double-buffered, f32
    vmem_est = 4 * (2 * (Fq * Fq + Fp * Fp + Fq + Fp) + 4 * C * M * P)
    vmem_limit = int(min(max(2 * vmem_est + (4 << 20), 16 << 20), 48 << 20))

    out4 = pl.pallas_call(
        _block3d_kernel,
        out_shape=jax.ShapeDtypeStruct((B, C, M, P), x.dtype),
        grid_spec=pltpu.PrefetchScalarGridSpec(
            num_scalar_prefetch=0,
            grid=(B,),
            in_specs=[
                pl.BlockSpec((1, C, M, P), lambda b: (b, 0, 0, 0)),
                # constant index_maps -> weights/biases DMA'd once, stay VMEM-resident
                pl.BlockSpec((Fq, Fq), lambda b: (0, 0)),
                pl.BlockSpec((Fq, 1), lambda b: (0, 0)),
                pl.BlockSpec((Fp, Fp), lambda b: (0, 0)),
                pl.BlockSpec((1, Fp), lambda b: (0, 0)),
            ],
            out_specs=pl.BlockSpec((1, C, M, P), lambda b: (b, 0, 0, 0)),
        ),
        compiler_params=pltpu.CompilerParams(
            dimension_semantics=("parallel",),        # v7x: batch split across 2 TCs
            vmem_limit_bytes=vmem_limit,
        ),
        cost_estimate=pl.CostEstimate(
            flops=flops, transcendentals=0, bytes_accessed=bytes_accessed),
    )(x4, fused["Q"], fused["bQ"], fused["Pt"], fused["bP"])

    return out4.reshape(B, C, D, H, W, pd, ph, pw)


# ---------------------------------------------------------------------------
# One-time weight preprocessing: collapse each 3-linear group into one dense map
# ---------------------------------------------------------------------------
def _fuse_group(params, axes, sizes, C):
    """Dense (F, F) matrix + (F,) bias for one group of three axial linears.

    Group feature flattening order is (c, s0, s1, s2) (c major).  Each axial linear k
    (PyTorch weight W_k of shape (S_k*C, S_k*C), feature order s_k-major / c-minor on
    both sides) contributes W_k on (c, s_k) Kronecker'd with identities on the other
    two group axes.  Broadcast multiplies/adds only -> exact in f32.
    """
    n = len(axes)
    F = C * int(np.prod(sizes))
    mat = jnp.zeros((C, *sizes, C, *sizes), jnp.float32)
    bias = jnp.zeros((C, *sizes), jnp.float32)
    for i, ax in enumerate(axes):
        W, b = params[ax]
        S = sizes[i]
        W4 = W.reshape(S, C, S, C)                   # [s', c', s, c]
        term = jnp.transpose(W4, (1, 0, 3, 2))       # [c', s', c, s]
        shp = [C] + [1] * n + [C] + [1] * n
        shp[1 + i] = S
        shp[2 + n + i] = S
        term = term.reshape(shp)
        for j in range(n):                           # deltas on the untouched axes
            if j == i:
                continue
            eye_shp = [1] * (2 * n + 2)
            eye_shp[1 + j] = sizes[j]
            eye_shp[2 + n + j] = sizes[j]
            term = term * jnp.eye(sizes[j], dtype=jnp.float32).reshape(eye_shp)
        mat = mat + term
        b2 = b.reshape(S, C).T                       # [c', s']
        bshp = [C] + [1] * n
        bshp[1 + i] = S
        bias = bias + b2.reshape(bshp)
    return mat.reshape(F, F), bias.reshape(F)


def fuse_block3d_params(params, shape):
    """Precompute the two fused group maps (done once, like a weight transpose)."""
    C = shape[1]
    image_sizes = [shape[a] for a in (2, 3, 4)]      # D, H, W
    patch_sizes = [shape[a] for a in (5, 6, 7)]      # pd, ph, pw
    Q, bQ = _fuse_group(params, (2, 3, 4), image_sizes, C)    # acts on (c,d,h,w)
    Pm, bP = _fuse_group(params, (5, 6, 7), patch_sizes, C)   # acts on (c,pd,ph,pw)
    Fq, Fp = Q.shape[0], Pm.shape[0]
    return {
        "Q": Q,                       # kernel uses Q as a left-multiply
        "bQ": bQ.reshape(Fq, 1),
        "Pt": Pm.T,                   # kernel computes xp @ Pt
        "bP": bP.reshape(1, Fp),
    }


def init_params(key, shape):
    """nn.Linear-style uniform init, deterministic from `key` (PyTorch layout)."""
    C = shape[1]
    params = {}
    for k in (2, 3, 4, 5, 6, 7):
        f = C * shape[k]                 # in_features == out_features here
        key, kw, kb = jax.random.split(key, 3)
        bound = 1.0 / np.sqrt(f)
        Wk = jax.random.uniform(kw, (f, f), jnp.float32, -bound, bound)
        bk = jax.random.uniform(kb, (f,), jnp.float32, -bound, bound)
        params[k] = (Wk, bk)
    return params


# ---------------------------------------------------------------------------
# Pure-JAX reference (mirrors the PyTorch module, per-axis) for validation
# ---------------------------------------------------------------------------
_AXIAL_DIMS = (5, 6, 7, 2, 3, 4)  # patch_d, patch_h, patch_w, image_d, image_h, image_w


def ref_forward(x, params):
    def ref_lin(x, k, Wk, bk):
        perm = [0] + [d for d in range(2, 8) if d != k] + [k, 1]
        xp = jnp.transpose(x, perm)
        lead = xp.shape[:-2]
        s_k, s_1 = xp.shape[-2], xp.shape[-1]
        y2 = jnp.dot(xp.reshape(-1, s_k * s_1), Wk.T,
                     precision=jax.lax.Precision.HIGHEST) + bk
        yp = y2.reshape(*lead, s_k, s_1)
        return jnp.transpose(yp, tuple(int(i) for i in np.argsort(perm)))

    y = ref_lin(x, _AXIAL_DIMS[0], *params[_AXIAL_DIMS[0]])
    for k in _AXIAL_DIMS[1:]:
        y = y + ref_lin(x, k, *params[k])
    y = jnp.where(y > 0, y, 0.01 * y)
    return x + y


if __name__ == "__main__":
    key = jax.random.PRNGKey(0)
    kx, kp = jax.random.split(key)

    # (B, C, D, H, W, pd, ph, pw): input_shape == output_shape == (4,4,4,4,4,4,4)
    shape = (2, 4, 4, 4, 4, 4, 4, 4)
    x = jax.random.normal(kx, shape, jnp.float32)
    params = init_params(kp, shape)

    fused = fuse_block3d_params(params, shape)   # one-time weight preprocessing
    fwd = jax.jit(functools.partial(block3d_forward, fused=fused))
    y = fwd(x)
    jax.block_until_ready(y)

    y_ref = ref_forward(x, params)
    # f32 MXU matmuls with K=256 and a different (but exact) summation grouping than
    # the per-axis reference -> allow a few x1e-5 of accumulated rounding.
    np.testing.assert_allclose(np.asarray(y), np.asarray(y_ref), rtol=1e-4, atol=1e-4)

    print("KERNEL_OK")
</pallas_src>

<mosaic_0001>
module attributes {stable_mosaic.version = 11 : i64} {
  func.func @_block3d_kernel(%arg0: i32, %arg1: memref<1x4x64x64xf32, #tpu.memory_space<vmem>>, %arg2: memref<256x256xf32, #tpu.memory_space<vmem>>, %arg3: memref<256x1xf32, #tpu.memory_space<vmem>>, %arg4: memref<256x256xf32, #tpu.memory_space<vmem>>, %arg5: memref<1x256xf32, #tpu.memory_space<vmem>>, %arg6: memref<1x4x64x64xf32, #tpu.memory_space<vmem>>) attributes {dimension_semantics = [#tpu.dimension_semantics<parallel>], iteration_bounds = array<i64: 2>, scalar_prefetch = 0 : i64, scratch_operands = 0 : i64, tpu.core_type = #tpu.core_type<tc>, window_params = [{transform_indices = @transform_0, window_bounds = array<i64: 1, 4, 64, 64>}, {pipeline_mode = #tpu.pipeline_mode<synchronous>, transform_indices = @transform_1, window_bounds = array<i64: 256, 256>}, {pipeline_mode = #tpu.pipeline_mode<synchronous>, transform_indices = @transform_2, window_bounds = array<i64: 256, 1>}, {pipeline_mode = #tpu.pipeline_mode<synchronous>, transform_indices = @transform_3, window_bounds = array<i64: 256, 256>}, {pipeline_mode = #tpu.pipeline_mode<synchronous>, transform_indices = @transform_4, window_bounds = array<i64: 1, 256>}, {transform_indices = @transform_5, window_bounds = array<i64: 1, 4, 64, 64>}]} {
    %c0 = arith.constant 0 : index
    %c0_0 = arith.constant 0 : index
    %c0_1 = arith.constant 0 : index
    %c0_2 = arith.constant 0 : index
    %0 = vector.load %arg1[%c0, %c0_0, %c0_1, %c0_2] : memref<1x4x64x64xf32, #tpu.memory_space<vmem>>, vector<1x4x64x64xf32>
    %1 = vector.shape_cast %0 : vector<1x4x64x64xf32> to vector<256x64xf32>
    %c0_3 = arith.constant 0 : index
    %c0_4 = arith.constant 0 : index
    %2 = vector.load %arg2[%c0_3, %c0_4] : memref<256x256xf32, #tpu.memory_space<vmem>>, vector<256x256xf32>
    %cst = arith.constant dense<0.000000e+00> : vector<256x64xf32>
    %3 = tpu.matmul %2, %1, %cst {dimension_numbers = #tpu.dot_dimension_numbers<[1], [0], [0], [1], [0, 0, 1, 1], [], []>} : vector<256x256xf32>, vector<256x64xf32>, vector<256x64xf32> -> vector<256x64xf32>
    %c0_5 = arith.constant 0 : index
    %c0_6 = arith.constant 0 : index
    %4 = vector.load %arg3[%c0_5, %c0_6] : memref<256x1xf32, #tpu.memory_space<vmem>>, vector<256x1xf32>
    %5 = vector.broadcast %4 : vector<256x1xf32> to vector<256x64xf32>
    %6 = arith.addf %3, %5 : vector<256x64xf32>
    %c0_7 = arith.constant 0 : index
    %c0_8 = arith.constant 0 : index
    %c0_9 = arith.constant 0 : index
    %c0_10 = arith.constant 0 : index
    %7 = vector.load %arg1[%c0_7, %c0_8, %c0_9, %c0_10] : memref<1x4x64x64xf32, #tpu.memory_space<vmem>>, vector<1x1x64x64xf32>
    %8 = vector.shape_cast %7 : vector<1x1x64x64xf32> to vector<64x64xf32>
    %c0_11 = arith.constant 0 : index
    %c1 = arith.constant 1 : index
    %c0_12 = arith.constant 0 : index
    %c0_13 = arith.constant 0 : index
    %9 = vector.load %arg1[%c0_11, %c1, %c0_12, %c0_13] : memref<1x4x64x64xf32, #tpu.memory_space<vmem>>, vector<1x1x64x64xf32>
    %10 = vector.shape_cast %9 : vector<1x1x64x64xf32> to vector<64x64xf32>
    %c0_14 = arith.constant 0 : index
    %c2 = arith.constant 2 : index
    %c0_15 = arith.constant 0 : index
    %c0_16 = arith.constant 0 : index
    %11 = vector.load %arg1[%c0_14, %c2, %c0_15, %c0_16] : memref<1x4x64x64xf32, #tpu.memory_space<vmem>>, vector<1x1x64x64xf32>
    %12 = vector.shape_cast %11 : vector<1x1x64x64xf32> to vector<64x64xf32>
    %c0_17 = arith.constant 0 : index
    %c3 = arith.constant 3 : index
    %c0_18 = arith.constant 0 : index
    %c0_19 = arith.constant 0 : index
    %13 = vector.load %arg1[%c0_17, %c3, %c0_18, %c0_19] : memref<1x4x64x64xf32, #tpu.memory_space<vmem>>, vector<1x1x64x64xf32>
    %14 = vector.shape_cast %13 : vector<1x1x64x64xf32> to vector<64x64xf32>
    %15 = tpu.concatenate %8, %10, %12, %14 in 1 : vector<64x64xf32>, vector<64x64xf32>, vector<64x64xf32>, vector<64x64xf32> -> vector<64x256xf32>
    %c0_20 = arith.constant 0 : index
    %c0_21 = arith.constant 0 : index
    %16 = vector.load %arg4[%c0_20, %c0_21] : memref<256x256xf32, #tpu.memory_space<vmem>>, vector<256x256xf32>
    %cst_22 = arith.constant dense<0.000000e+00> : vector<64x256xf32>
    %17 = tpu.matmul %15, %16, %cst_22 {dimension_numbers = #tpu.dot_dimension_numbers<[1], [0], [0], [1], [0, 0, 1, 1], [], []>} : vector<64x256xf32>, vector<256x256xf32>, vector<64x256xf32> -> vector<64x256xf32>
    %c0_23 = arith.constant 0 : index
    %c0_24 = arith.constant 0 : index
    %18 = vector.load %arg5[%c0_23, %c0_24] : memref<1x256xf32, #tpu.memory_space<vmem>>, vector<1x256xf32>
    %19 = vector.broadcast %18 : vector<1x256xf32> to vector<64x256xf32>
    %20 = arith.addf %17, %19 : vector<64x256xf32>
    %21 = vector.extract_strided_slice %20 {offsets = [0, 0], sizes = [64, 64], strides = [1, 1]} : vector<64x256xf32> to vector<64x64xf32>
    %22 = vector.extract_strided_slice %6 {offsets = [0, 0], sizes = [64, 64], strides = [1, 1]} : vector<256x64xf32> to vector<64x64xf32>
    %23 = arith.addf %21, %22 : vector<64x64xf32>
    %cst_25 = arith.constant 0.000000e+00 : f32
    %24 = vector.broadcast %cst_25 : f32 to vector<64x64xf32>
    %25 = arith.cmpf ogt, %23, %24 : vector<64x64xf32>
    %cst_26 = arith.constant 0.00999999977 : f32
    %26 = vector.broadcast %cst_26 : f32 to vector<64x64xf32>
    %27 = arith.mulf %26, %23 : vector<64x64xf32>
    %28 = arith.select %25, %23, %27 : vector<64x64xi1>, vector<64x64xf32>
    %29 = arith.addf %8, %28 : vector<64x64xf32>
    %c0_27 = arith.constant 0 : index
    %c0_28 = arith.constant 0 : index
    %c0_29 = arith.constant 0 : index
    %c0_30 = arith.constant 0 : index
    %30 = vector.load %arg6[%c0_27, %c0_28, %c0_29, %c0_30] : memref<1x4x64x64xf32, #tpu.memory_space<vmem>>, vector<1x1x64x64xf32>
    %31 = vector.shape_cast %30 : vector<1x1x64x64xf32> to vector<64x64xf32>
    %32 = vector.shape_cast %29 : vector<64x64xf32> to vector<1x1x64x64xf32>
    tpu.vector_store %arg6[%c0_27, %c0_28, %c0_29, %c0_30], %32 {strides = array<i32>} : memref<1x4x64x64xf32, #tpu.memory_space<vmem>>, vector<1x1x64x64xf32>,
    %33 = vector.extract_strided_slice %20 {offsets = [0, 64], sizes = [64, 64], strides = [1, 1]} : vector<64x256xf32> to vector<64x64xf32>
    %34 = vector.extract_strided_slice %6 {offsets = [64, 0], sizes = [64, 64], strides = [1, 1]} : vector<256x64xf32> to vector<64x64xf32>
    %35 = arith.addf %33, %34 : vector<64x64xf32>
    %cst_31 = arith.constant 0.000000e+00 : f32
    %36 = vector.broadcast %cst_31 : f32 to vector<64x64xf32>
    %37 = arith.cmpf ogt, %35, %36 : vector<64x64xf32>
    %cst_32 = arith.constant 0.00999999977 : f32
    %38 = vector.broadcast %cst_32 : f32 to vector<64x64xf32>
    %39 = arith.mulf %38, %35 : vector<64x64xf32>
    %40 = arith.select %37, %35, %39 : vector<64x64xi1>, vector<64x64xf32>
    %41 = arith.addf %10, %40 : vector<64x64xf32>
    %c0_33 = arith.constant 0 : index
    %c1_34 = arith.constant 1 : index
    %c0_35 = arith.constant 0 : index
    %c0_36 = arith.constant 0 : index
    %42 = vector.load %arg6[%c0_33, %c1_34, %c0_35, %c0_36] : memref<1x4x64x64xf32, #tpu.memory_space<vmem>>, vector<1x1x64x64xf32>
    %43 = vector.shape_cast %42 : vector<1x1x64x64xf32> to vector<64x64xf32>
    %44 = vector.shape_cast %41 : vector<64x64xf32> to vector<1x1x64x64xf32>
    tpu.vector_store %arg6[%c0_33, %c1_34, %c0_35, %c0_36], %44 {strides = array<i32>} : memref<1x4x64x64xf32, #tpu.memory_space<vmem>>, vector<1x1x64x64xf32>,
    %45 = vector.extract_strided_slice %20 {offsets = [0, 128], sizes = [64, 64], strides = [1, 1]} : vector<64x256xf32> to vector<64x64xf32>
    %46 = vector.extract_strided_slice %6 {offsets = [128, 0], sizes = [64, 64], strides = [1, 1]} : vector<256x64xf32> to vector<64x64xf32>
    %47 = arith.addf %45, %46 : vector<64x64xf32>
    %cst_37 = arith.constant 0.000000e+00 : f32
    %48 = vector.broadcast %cst_37 : f32 to vector<64x64xf32>
    %49 = arith.cmpf ogt, %47, %48 : vector<64x64xf32>
    %cst_38 = arith.constant 0.00999999977 : f32
    %50 = vector.broadcast %cst_38 : f32 to vector<64x64xf32>
    %51 = arith.mulf %50, %47 : vector<64x64xf32>
    %52 = arith.select %49, %47, %51 : vector<64x64xi1>, vector<64x64xf32>
    %53 = arith.addf %12, %52 : vector<64x64xf32>
    %c0_39 = arith.constant 0 : index
    %c2_40 = arith.constant 2 : index
    %c0_41 = arith.constant 0 : index
    %c0_42 = arith.constant 0 : index
    %54 = vector.load %arg6[%c0_39, %c2_40, %c0_41, %c0_42] : memref<1x4x64x64xf32, #tpu.memory_space<vmem>>, vector<1x1x64x64xf32>
    %55 = vector.shape_cast %54 : vector<1x1x64x64xf32> to vector<64x64xf32>
    %56 = vector.shape_cast %53 : vector<64x64xf32> to vector<1x1x64x64xf32>
    tpu.vector_store %arg6[%c0_39, %c2_40, %c0_41, %c0_42], %56 {strides = array<i32>} : memref<1x4x64x64xf32, #tpu.memory_space<vmem>>, vector<1x1x64x64xf32>,
    %57 = vector.extract_strided_slice %20 {offsets = [0, 192], sizes = [64, 64], strides = [1, 1]} : vector<64x256xf32> to vector<64x64xf32>
    %58 = vector.extract_strided_slice %6 {offsets = [192, 0], sizes = [64, 64], strides = [1, 1]} : vector<256x64xf32> to vector<64x64xf32>
    %59 = arith.addf %57, %58 : vector<64x64xf32>
    %cst_43 = arith.constant 0.000000e+00 : f32
    %60 = vector.broadcast %cst_43 : f32 to vector<64x64xf32>
    %61 = arith.cmpf ogt, %59, %60 : vector<64x64xf32>
    %cst_44 = arith.constant 0.00999999977 : f32
    %62 = vector.broadcast %cst_44 : f32 to vector<64x64xf32>
    %63 = arith.mulf %62, %59 : vector<64x64xf32>
    %64 = arith.select %61, %59, %63 : vector<64x64xi1>, vector<64x64xf32>
    %65 = arith.addf %14, %64 : vector<64x64xf32>
    %c0_45 = arith.constant 0 : index
    %c3_46 = arith.constant 3 : index
    %c0_47 = arith.constant 0 : index
    %c0_48 = arith.constant 0 : index
    %66 = vector.load %arg6[%c0_45, %c3_46, %c0_47, %c0_48] : memref<1x4x64x64xf32, #tpu.memory_space<vmem>>, vector<1x1x64x64xf32>
    %67 = vector.shape_cast %66 : vector<1x1x64x64xf32> to vector<64x64xf32>
    %68 = vector.shape_cast %65 : vector<64x64xf32> to vector<1x1x64x64xf32>
    tpu.vector_store %arg6[%c0_45, %c3_46, %c0_47, %c0_48], %68 {strides = array<i32>} : memref<1x4x64x64xf32, #tpu.memory_space<vmem>>, vector<1x1x64x64xf32>,
    return
  }
  func.func @transform_0(%arg0: i32) -> (i32, i32, i32, i32) {
    %c0_i32 = arith.constant 0 : i32
    %c0_i32_0 = arith.constant 0 : i32
    %c0_i32_1 = arith.constant 0 : i32
    %c0_i32_2 = arith.constant 0 : i32
    return %arg0, %c0_i32, %c0_i32_0, %c0_i32_1 : i32, i32, i32, i32
  }
  func.func @transform_1(%arg0: i32) -> (i32, i32) {
    %c0_i32 = arith.constant 0 : i32
    %c0_i32_0 = arith.constant 0 : i32
    %c0_i32_1 = arith.constant 0 : i32
    return %c0_i32, %c0_i32_0 : i32, i32
  }
  func.func @transform_2(%arg0: i32) -> (i32, i32) {
    %c0_i32 = arith.constant 0 : i32
    %c0_i32_0 = arith.constant 0 : i32
    %c0_i32_1 = arith.constant 0 : i32
    return %c0_i32, %c0_i32_0 : i32, i32
  }
  func.func @transform_3(%arg0: i32) -> (i32, i32) {
    %c0_i32 = arith.constant 0 : i32
    %c0_i32_0 = arith.constant 0 : i32
    %c0_i32_1 = arith.constant 0 : i32
    return %c0_i32, %c0_i32_0 : i32, i32
  }
  func.func @transform_4(%arg0: i32) -> (i32, i32) {
    %c0_i32 = arith.constant 0 : i32
    %c0_i32_0 = arith.constant 0 : i32
    %c0_i32_1 = arith.constant 0 : i32
    return %c0_i32, %c0_i32_0 : i32, i32
  }
  func.func @transform_5(%arg0: i32) -> (i32, i32, i32, i32) {
    %c0_i32 = arith.constant 0 : i32
    %c0_i32_0 = arith.constant 0 : i32
    %c0_i32_1 = arith.constant 0 : i32
    %c0_i32_2 = arith.constant 0 : i32
    return %arg0, %c0_i32, %c0_i32_0, %c0_i32_1 : i32, i32, i32, i32
  }
}

</mosaic_0001>

<llo_original>
// kernel: block3d_forward.1
$region0: #{block3d_forward.1}
  #allocation0 [shape = 'u32[]', space=smem, size = 0x4, offset = 0x4, fixed_abs, tag = 'smem constant byte address 0x4 - core index']
  #allocation1 [shape = 'u32[144,128]{1,0:T(1,128)}', space=vmem, size = 0x12000, scoped, tag = 'internal scratch']
  %s0 = inlined_call_operand.vmem [shape: f32[2,4,64,64], index: 0, kind: input, shape index: {}]
  %s1 = inlined_call_operand.vmem [shape: f32[256,256], index: 1, kind: input, shape index: {}]
  %s2 = inlined_call_operand.vmem [shape: f32[256,1], index: 2, kind: input, shape index: {}]
  %s3 = inlined_call_operand.vmem [shape: f32[256,256], index: 3, kind: input, shape index: {}]
  %s4 = inlined_call_operand.vmem [shape: f32[1,256], index: 4, kind: input, shape index: {}]
  %s5 = inlined_call_operand.vmem [shape: f32[2,4,64,64], index: 5, kind: output, shape index: {}]
  %s6 = sld [smem:[#allocation0]]
  $region53: #{block3d_forward.1} parent=0
    _
  %s8 = ssub.s32 1, %s6
  %s9 = scalar_select 0, %s8, %s6
  loop: start=0, step=1, limit=4
  $region2: #{block3d_forward.1} parent=0 // loop_pre_header
    _
  $region3: #{block3d_forward.1} parent=0 // loop_header
    %s11 = sphi 0, %s15
    %p12 = scmp.ge.s32.totalorder %s11, 4
    %s21 = sphi 0, %s23
    %s24 = sphi 0, %s21
    %s25 = sphi 0, %s24
    %s41 = sphi 0, %s25
    %s45 = sphi 0, %s45
    %s47 = sphi 0, %s45
    %s48 = sphi 0, %s47
    %s62 = sphi 0, %s48
    %s66 = sphi 0, %s66
    %s68 = sphi 0, %s66
    %s69 = sphi 0, %s68
    %s83 = sphi 0, %s69
    %s87 = sphi 0, %s87
    %s89 = sphi 0, %s87
    %s90 = sphi 0, %s89
    %s104 = sphi 0, %s90
    %s108 = sphi 0, %s108
    %s110 = sphi 0, %s108
    %s111 = sphi 0, %s110
    %s125 = sphi 0, %s111
    %s131 = sphi 0, %s133
    %s134 = sphi 0, %s131
    %s135 = sphi 0, %s134
    %s151 = sphi 0, %s135
  $region4: #{block3d_forward.1} parent=0 // loop_header_branch
    %14 = sbr.rel (%p12) target = $region8
  $region5: #{block3d_forward.1} parent=0 // loop_body
    %s16 = ssub.s32 %s11, 1
    %s17 = ssub.s32 %s11, 2
    %s18 = sadd.s32 %s11, 1
    %s19 = ssub.s32 %s11, %s18
    %p20 = scmp.eq.s32.totalorder %s19, 0
    %s22 = sadd.s32 %s21, 1
    %s23 = scalar_select %p20, %s21, %s22
    %p26 = pneg %p20
    %p27 = scmp.eq.s32.totalorder %s11, 1
    %p28 = por %p26, %p27
    %p29 = scmp.ne.s32.totalorder %s21, %s24
    %p30 = scmp.eq.s32.totalorder %s11, 0
    %p31 = por %p29, %p30
    %p32 = scmp.ne.s32.totalorder %s21, %s24
    %p33 = scmp.eq.s32.totalorder %s16, 1
    %p34 = por %p32, %p33
    %p35 = scmp.ne.s32.totalorder %s24, %s25
    %p36 = scmp.eq.s32.totalorder %s16, 0
    %p37 = por %p35, %p36
    %p38 = scmp.ne.s32.totalorder %s24, %s25
    %p39 = scmp.eq.s32.totalorder %s17, 1
    %p40 = por %p38, %p39
    %p42 = scmp.ne.s32.totalorder %s25, %s41
    %p43 = scmp.eq.s32.totalorder %s17, 0
    %p44 = por %p42, %p43
    %s46 = sadd.s32 %s45, 1
    %p49 = scmp.eq.s32.totalorder %s11, 1
    %p50 = scmp.ne.s32.totalorder %s45, %s47
    %p51 = scmp.eq.s32.totalorder %s11, 0
    %p52 = por %p50, %p51
    %p53 = scmp.ne.s32.totalorder %s45, %s47
    %p54 = scmp.eq.s32.totalorder %s16, 1
    %p55 = por %p53, %p54
    %p56 = scmp.ne.s32.totalorder %s47, %s48
    %p57 = scmp.eq.s32.totalorder %s16, 0
    %p58 = por %p56, %p57
    %p59 = scmp.ne.s32.totalorder %s47, %s48
    %p60 = scmp.eq.s32.totalorder %s17, 1
    %p61 = por %p59, %p60
    %p63 = scmp.ne.s32.totalorder %s48, %s62
    %p64 = scmp.eq.s32.totalorder %s17, 0
    %p65 = por %p63, %p64
    %s67 = sadd.s32 %s66, 1
    %p70 = scmp.eq.s32.totalorder %s11, 1
    %p71 = scmp.ne.s32.totalorder %s66, %s68
    %p72 = scmp.eq.s32.totalorder %s11, 0
    %p73 = por %p71, %p72
    %p74 = scmp.ne.s32.totalorder %s66, %s68
    %p75 = scmp.eq.s32.totalorder %s16, 1
    %p76 = por %p74, %p75
    %p77 = scmp.ne.s32.totalorder %s68, %s69
    %p78 = scmp.eq.s32.totalorder %s16, 0
    %p79 = por %p77, %p78
    %p80 = scmp.ne.s32.totalorder %s68, %s69
    %p81 = scmp.eq.s32.totalorder %s17, 1
    %p82 = por %p80, %p81
    %p84 = scmp.ne.s32.totalorder %s69, %s83
    %p85 = scmp.eq.s32.totalorder %s17, 0
    %p86 = por %p84, %p85
    %s88 = sadd.s32 %s87, 1
    %p91 = scmp.eq.s32.totalorder %s11, 1
    %p92 = scmp.ne.s32.totalorder %s87, %s89
    %p93 = scmp.eq.s32.totalorder %s11, 0
    %p94 = por %p92, %p93
    %p95 = scmp.ne.s32.totalorder %s87, %s89
    %p96 = scmp.eq.s32.totalorder %s16, 1
    %p97 = por %p95, %p96
    %p98 = scmp.ne.s32.totalorder %s89, %s90
    %p99 = scmp.eq.s32.totalorder %s16, 0
    %p100 = por %p98, %p99
    %p101 = scmp.ne.s32.totalorder %s89, %s90
    %p102 = scmp.eq.s32.totalorder %s17, 1
    %p103 = por %p101, %p102
    %p105 = scmp.ne.s32.totalorder %s90, %s104
    %p106 = scmp.eq.s32.totalorder %s17, 0
    %p107 = por %p105, %p106
    %s109 = sadd.s32 %s108, 1
    %p112 = scmp.eq.s32.totalorder %s11, 1
    %p113 = scmp.ne.s32.totalorder %s108, %s110
    %p114 = scmp.eq.s32.totalorder %s11, 0
    %p115 = por %p113, %p114
    %p116 = scmp.ne.s32.totalorder %s108, %s110
    %p117 = scmp.eq.s32.totalorder %s16, 1
    %p118 = por %p116, %p117
    %p119 = scmp.ne.s32.totalorder %s110, %s111
    %p120 = scmp.eq.s32.totalorder %s16, 0
    %p121 = por %p119, %p120
    %p122 = scmp.ne.s32.totalorder %s110, %s111
    %p123 = scmp.eq.s32.totalorder %s17, 1
    %p124 = por %p122, %p123
    %p126 = scmp.ne.s32.totalorder %s111, %s125
    %p127 = scmp.eq.s32.totalorder %s17, 0
    %p128 = por %p126, %p127
    %s129 = ssub.s32 %s11, %s18
    %p130 = scmp.eq.s32.totalorder %s129, 0
    %s132 = sadd.s32 %s131, 1
    %s133 = scalar_select %p130, %s131, %s132
    %p136 = pneg %p130
    %p137 = scmp.eq.s32.totalorder %s11, 1
    %p138 = por %p136, %p137
    %p139 = scmp.ne.s32.totalorder %s131, %s134
    %p140 = scmp.eq.s32.totalorder %s11, 0
    %p141 = por %p139, %p140
    %p142 = scmp.ne.s32.totalorder %s131, %s134
    %p143 = scmp.eq.s32.totalorder %s16, 1
    %p144 = por %p142, %p143
    %p145 = scmp.ne.s32.totalorder %s134, %s135
    %p146 = scmp.eq.s32.totalorder %s16, 0
    %p147 = por %p145, %p146
    %p148 = scmp.ne.s32.totalorder %s134, %s135
    %p149 = scmp.eq.s32.totalorder %s17, 1
    %p150 = por %p148, %p149
    %p152 = scmp.ne.s32.totalorder %s135, %s151
    %p153 = scmp.eq.s32.totalorder %s17, 0
    %p154 = por %p152, %p153
    %p155 = scmp.le.s32.totalorder 1, %s11
    %p156 = scmp.lt.s32.totalorder %s11, 3
    %p157 = pnand %p155, %p156
    %p158 = pneg %p157
    // Predicated region
    $region9: #{block3d_forward.1} parent=5 // pred_check
      _
    $region10: #{block3d_forward.1} parent=5 // pred_check_branch
      %160 = sbr.rel (%p157) target = $region12
    $region11: #{block3d_forward.1} parent=5 // pred_region
      %s161 = ssub.s32 %s11, 1
      // Predicated region
      $region13: #{block3d_forward.1} parent=11 // pred_check
        %p162 = pneg %p58
      $region14: #{block3d_forward.1} parent=11 // pred_check_branch
        %164 = sbr.rel (%p162) target = $region16
      $region15: #{block3d_forward.1} parent=11 // pred_region
        _
      $region16: #{block3d_forward.1} parent=11 // pred_fallthru
        _
      // Predicated region
      $region17: #{block3d_forward.1} parent=11 // pred_check
        %p165 = pneg %p79
      $region18: #{block3d_forward.1} parent=11 // pred_check_branch
        %167 = sbr.rel (%p165) target = $region20
      $region19: #{block3d_forward.1} parent=11 // pred_region
        _
      $region20: #{block3d_forward.1} parent=11 // pred_fallthru
        _
      // Predicated region
      $region21: #{block3d_forward.1} parent=11 // pred_check
        %p168 = pneg %p100
      $region22: #{block3d_forward.1} parent=11 // pred_check_branch
        %170 = sbr.rel (%p168) target = $region24
      $region23: #{block3d_forward.1} parent=11 // pred_region
        _
      $region24: #{block3d_forward.1} parent=11 // pred_fallthru
        _
      // Predicated region
      $region25: #{block3d_forward.1} parent=11 // pred_check
        %p171 = pneg %p121
      $region26: #{block3d_forward.1} parent=11 // pred_check_branch
        %173 = sbr.rel (%p171) target = $region28
      $region27: #{block3d_forward.1} parent=11 // pred_region
        _
      $region28: #{block3d_forward.1} parent=11 // pred_fallthru
        _
    $region12: #{block3d_forward.1} parent=5 // pred_fallthru
      _
    %p174 = scmp.lt.s32.totalorder %s11, 2
    // Predicated region
    $region29: #{block3d_forward.1} parent=5 // pred_check
      %p175 = pneg %p174
    $region30: #{block3d_forward.1} parent=5 // pred_check_branch
      %177 = sbr.rel (%p175) target = $region32
    $region31: #{block3d_forward.1} parent=5 // pred_region
      // Predicated region
      $region33: #{block3d_forward.1} parent=31 // pred_check
        %p178 = pneg %p31
      $region34: #{block3d_forward.1} parent=31 // pred_check_branch
        %180 = sbr.rel (%p178) target = $region36
      $region35: #{block3d_forward.1} parent=31 // pred_region
        %p181 = scmp.lt.s32.totalorder %s11, 1
        %s182 = scalar_select %p181, %s11, 1
        %s183 = smul.addr %s182, 32
        %s184 = smul.addr %s183, 8
        %s185 = scalar_lea.vmem %s0, %s184
      $region36: #{block3d_forward.1} parent=31 // pred_fallthru
        _
    $region32: #{block3d_forward.1} parent=5 // pred_fallthru
      _
    %p186 = scmp.le.s32.totalorder 1, %s11
    %p187 = scmp.lt.s32.totalorder %s11, 3
    %p188 = pnand %p186, %p187
    %p189 = pneg %p188
    // Predicated region
    $region37: #{block3d_forward.1} parent=5 // pred_check
      _
    $region38: #{block3d_forward.1} parent=5 // pred_check_branch
      %191 = sbr.rel (%p188) target = $region40
    $region39: #{block3d_forward.1} parent=5 // pred_region
      %s192 = ssub.s32 %s11, 1
      %p193 = scmp.lt.s32.totalorder %s16, 1
      %s194 = scalar_select %p193, %s16, 1
      %s195 = smul.addr %s194, 32
      %s196 = smul.addr %s195, 8
      %s197 = scalar_lea.vmem %s0, %s196
      %p198 = pneg %p37
      %p199 = pneg %p34
      %p200 = pneg %p58
      %p201 = pneg %p55
      %p202 = pneg %p79
      %p203 = pneg %p76
      %p204 = pneg %p100
      %p205 = pneg %p97
      %p206 = pneg %p121
      %p207 = pneg %p118
      %p208 = pneg %p147
      %p209 = pneg %p144
      %p210 = scmp.lt.s32.totalorder %s16, 1
      %s211 = scalar_select %p210, %s16, 1
      %s212 = smul.addr %s211, 32
      %s213 = smul.addr %s212, 8
      %s214 = scalar_lea.vmem %s5, %s213
      %p215 = scmp.lt.s32.totalorder %s16, 1
      %s216 = scalar_select %p215, %s16, 1
      %s217 = smul.addr %s216, 32
      %s218 = smul.addr %s217, 8
      %s219 = scalar_lea.vmem %s0, %s218
      %p220 = scmp.lt.s32.totalorder %s16, 1
      %s221 = scalar_select %p220, %s16, 1
      %s222 = smul.addr %s221, 32
      %s223 = smul.addr %s222, 8
      %s224 = scalar_lea.vmem %s5, %s223
      %v225 = vld [vmem:[%s219] sm:$0xff]
      %v226 = vld [vmem:[%s219 + $0x8] sm:$0xff]
      %v227 = vld [vmem:[%s219 + $0x10] sm:$0xff]
      %v228 = vld [vmem:[%s219 + $0x18] sm:$0xff]
      %v229 = vld [vmem:[%s219 + $0x20] sm:$0xff]
      %v230 = vld [vmem:[%s219 + $0x28] sm:$0xff]
      %v231 = vld [vmem:[%s219 + $0x30] sm:$0xff]
      %v232 = vld [vmem:[%s219 + $0x38] sm:$0xff]
      %v233 = vld [vmem:[%s219 + $0x40] sm:$0xff]
      %v234 = vld [vmem:[%s219 + $0x48] sm:$0xff]
      %v235 = vld [vmem:[%s219 + $0x50] sm:$0xff]
      %v236 = vld [vmem:[%s219 + $0x58] sm:$0xff]
      %v237 = vld [vmem:[%s219 + $0x60] sm:$0xff]
      %v238 = vld [vmem:[%s219 + $0x68] sm:$0xff]
      %v239 = vld [vmem:[%s219 + $0x70] sm:$0xff]
      %v240 = vld [vmem:[%s219 + $0x78] sm:$0xff]
      %v241 = vld [vmem:[%s219 + $0x80] sm:$0xff]
      %v242 = vld [vmem:[%s219 + $0x88] sm:$0xff]
      %v243 = vld [vmem:[%s219 + $0x90] sm:$0xff]
      %v244 = vld [vmem:[%s219 + $0x98] sm:$0xff]
      %v245 = vld [vmem:[%s219 + $0xa0] sm:$0xff]
      %v246 = vld [vmem:[%s219 + $0xa8] sm:$0xff]
      %v247 = vld [vmem:[%s219 + $0xb0] sm:$0xff]
      %v248 = vld [vmem:[%s219 + $0xb8] sm:$0xff]
      %v249 = vld [vmem:[%s219 + $0xc0] sm:$0xff]
      %v250 = vld [vmem:[%s219 + $0xc8] sm:$0xff]
      %v251 = vld [vmem:[%s219 + $0xd0] sm:$0xff]
      %v252 = vld [vmem:[%s219 + $0xd8] sm:$0xff]
      %v253 = vld [vmem:[%s219 + $0xe0] sm:$0xff]
      %v254 = vld [vmem:[%s219 + $0xe8] sm:$0xff]
      %v255 = vld [vmem:[%s219 + $0xf0] sm:$0xff]
      %v256 = vld [vmem:[%s219 + $0xf8] sm:$0xff]
      %v257 = vld [vmem:[%s1] sm:$0xff]
      %v258 = vld [vmem:[%s1 + $0x8] sm:$0xff]
      %v259 = vld [vmem:[%s1 + $0x10] sm:$0xff]
      %v260 = vld [vmem:[%s1 + $0x18] sm:$0xff]
      %v261 = vld [vmem:[%s1 + $0x20] sm:$0xff]
      %v262 = vld [vmem:[%s1 + $0x28] sm:$0xff]
      %v263 = vld [vmem:[%s1 + $0x30] sm:$0xff]
      %v264 = vld [vmem:[%s1 + $0x38] sm:$0xff]
      %v265 = vld [vmem:[%s1 + $0x40] sm:$0xff]
      %v266 = vld [vmem:[%s1 + $0x48] sm:$0xff]
      %v267 = vld [vmem:[%s1 + $0x50] sm:$0xff]
      %v268 = vld [vmem:[%s1 + $0x58] sm:$0xff]
      %v269 = vld [vmem:[%s1 + $0x60] sm:$0xff]
      %v270 = vld [vmem:[%s1 + $0x68] sm:$0xff]
      %v271 = vld [vmem:[%s1 + $0x70] sm:$0xff]
      %v272 = vld [vmem:[%s1 + $0x78] sm:$0xff]
      %v273 = vld [vmem:[%s1 + $0x80] sm:$0xff]
      %v274 = vld [vmem:[%s1 + $0x88] sm:$0xff]
      %v275 = vld [vmem:[%s1 + $0x90] sm:$0xff]
      %v276 = vld [vmem:[%s1 + $0x98] sm:$0xff]
      %v277 = vld [vmem:[%s1 + $0xa0] sm:$0xff]
      %v278 = vld [vmem:[%s1 + $0xa8] sm:$0xff]
      %v279 = vld [vmem:[%s1 + $0xb0] sm:$0xff]
      %v280 = vld [vmem:[%s1 + $0xb8] sm:$0xff]
      %v281 = vld [vmem:[%s1 + $0xc0] sm:$0xff]
      %v282 = vld [vmem:[%s1 + $0xc8] sm:$0xff]
      %v283 = vld [vmem:[%s1 + $0xd0] sm:$0xff]
      %v284 = vld [vmem:[%s1 + $0xd8] sm:$0xff]
      %v285 = vld [vmem:[%s1 + $0xe0] sm:$0xff]
      %v286 = vld [vmem:[%s1 + $0xe8] sm:$0xff]
      %v287 = vld [vmem:[%s1 + $0xf0] sm:$0xff]
      %v288 = vld [vmem:[%s1 + $0xf8] sm:$0xff]
      %v289 = vld [vmem:[%s1 + $0x100] sm:$0xff]
      %v290 = vld [vmem:[%s1 + $0x108] sm:$0xff]
      %v291 = vld [vmem:[%s1 + $0x110] sm:$0xff]
      %v292 = vld [vmem:[%s1 + $0x118] sm:$0xff]
      %v293 = vld [vmem:[%s1 + $0x120] sm:$0xff]
      %v294 = vld [vmem:[%s1 + $0x128] sm:$0xff]
      %v295 = vld [vmem:[%s1 + $0x130] sm:$0xff]
      %v296 = vld [vmem:[%s1 + $0x138] sm:$0xff]
      %v297 = vld [vmem:[%s1 + $0x140] sm:$0xff]
      %v298 = vld [vmem:[%s1 + $0x148] sm:$0xff]
      %v299 = vld [vmem:[%s1 + $0x150] sm:$0xff]
      %v300 = vld [vmem:[%s1 + $0x158] sm:$0xff]
      %v301 = vld [vmem:[%s1 + $0x160] sm:$0xff]
      %v302 = vld [vmem:[%s1 + $0x168] sm:$0xff]
      %v303 = vld [vmem:[%s1 + $0x170] sm:$0xff]
      %v304 = vld [vmem:[%s1 + $0x178] sm:$0xff]
      %v305 = vld [vmem:[%s1 + $0x180] sm:$0xff]
      %v306 = vld [vmem:[%s1 + $0x188] sm:$0xff]
      %v307 = vld [vmem:[%s1 + $0x190] sm:$0xff]
      %v308 = vld [vmem:[%s1 + $0x198] sm:$0xff]
      %v309 = vld [vmem:[%s1 + $0x1a0] sm:$0xff]
      %v310 = vld [vmem:[%s1 + $0x1a8] sm:$0xff]
      %v311 = vld [vmem:[%s1 + $0x1b0] sm:$0xff]
      %v312 = vld [vmem:[%s1 + $0x1b8] sm:$0xff]
      %v313 = vld [vmem:[%s1 + $0x1c0] sm:$0xff]
      %v314 = vld [vmem:[%s1 + $0x1c8] sm:$0xff]
      %v315 = vld [vmem:[%s1 + $0x1d0] sm:$0xff]
      %v316 = vld [vmem:[%s1 + $0x1d8] sm:$0xff]
      %v317 = vld [vmem:[%s1 + $0x1e0] sm:$0xff]
      %v318 = vld [vmem:[%s1 + $0x1e8] sm:$0xff]
      %v319 = vld [vmem:[%s1 + $0x1f0] sm:$0xff]
      %v320 = vld [vmem:[%s1 + $0x1f8] sm:$0xff]
      %v321 = vld [vmem:[%s2] sm:$0xff]
      %v322 = vld [vmem:[%s2 + $0x8] sm:$0xff]
      %v323 = vld [vmem:[%s2 + $0x10] sm:$0xff]
      %v324 = vld [vmem:[%s2 + $0x18] sm:$0xff]
      %v325 = vld [vmem:[%s2 + $0x20] sm:$0xff]
      %v326 = vld [vmem:[%s2 + $0x28] sm:$0xff]
      %v327 = vld [vmem:[%s2 + $0x30] sm:$0xff]
      %v328 = vld [vmem:[%s2 + $0x38] sm:$0xff]
      %v329 = vld [vmem:[%s2 + $0x40] sm:$0xff]
      %v330 = vld [vmem:[%s2 + $0x48] sm:$0xff]
      %v331 = vld [vmem:[%s2 + $0x50] sm:$0xff]
      %v332 = vld [vmem:[%s2 + $0x58] sm:$0xff]
      %v333 = vld [vmem:[%s2 + $0x60] sm:$0xff]
      %v334 = vld [vmem:[%s2 + $0x68] sm:$0xff]
      %v335 = vld [vmem:[%s2 + $0x70] sm:$0xff]
      %v336 = vld [vmem:[%s2 + $0x78] sm:$0xff]
      %v337 = vld [vmem:[%s2 + $0x80] sm:$0xff]
      %v338 = vld [vmem:[%s2 + $0x88] sm:$0xff]
      %v339 = vld [vmem:[%s2 + $0x90] sm:$0xff]
      %v340 = vld [vmem:[%s2 + $0x98] sm:$0xff]
      %v341 = vld [vmem:[%s2 + $0xa0] sm:$0xff]
      %v342 = vld [vmem:[%s2 + $0xa8] sm:$0xff]
      %v343 = vld [vmem:[%s2 + $0xb0] sm:$0xff]
      %v344 = vld [vmem:[%s2 + $0xb8] sm:$0xff]
      %v345 = vld [vmem:[%s2 + $0xc0] sm:$0xff]
      %v346 = vld [vmem:[%s2 + $0xc8] sm:$0xff]
      %v347 = vld [vmem:[%s2 + $0xd0] sm:$0xff]
      %v348 = vld [vmem:[%s2 + $0xd8] sm:$0xff]
      %v349 = vld [vmem:[%s2 + $0xe0] sm:$0xff]
      %v350 = vld [vmem:[%s2 + $0xe8] sm:$0xff]
      %v351 = vld [vmem:[%s2 + $0xf0] sm:$0xff]
      %v352 = vld [vmem:[%s2 + $0xf8] sm:$0xff]
      %354 = vset.pattern.permute.xlu0 0
      %355 = vperm.xlu0 %354, %v321
      %v356 = vpop.permute.xlu0 %355
      %359 = vset.pattern.permute.xlu0 0
      %360 = vperm.xlu0 %359, %v322
      %v361 = vpop.permute.xlu0 %360
      %364 = vset.pattern.permute.xlu0 0
      %365 = vperm.xlu0 %364, %v323
      %v366 = vpop.permute.xlu0 %365
      %369 = vset.pattern.permute.xlu0 0
      %370 = vperm.xlu0 %369, %v324
      %v371 = vpop.permute.xlu0 %370
      %374 = vset.pattern.permute.xlu0 0
      %375 = vperm.xlu0 %374, %v325
      %v376 = vpop.permute.xlu0 %375
      %379 = vset.pattern.permute.xlu0 0
      %380 = vperm.xlu0 %379, %v326
      %v381 = vpop.permute.xlu0 %380
      %384 = vset.pattern.permute.xlu0 0
      %385 = vperm.xlu0 %384, %v327
      %v386 = vpop.permute.xlu0 %385
      %389 = vset.pattern.permute.xlu0 0
      %390 = vperm.xlu0 %389, %v328
      %v391 = vpop.permute.xlu0 %390
      %394 = vset.pattern.permute.xlu0 0
      %395 = vperm.xlu0 %394, %v329
      %v396 = vpop.permute.xlu0 %395
      %399 = vset.pattern.permute.xlu0 0
      %400 = vperm.xlu0 %399, %v330
      %v401 = vpop.permute.xlu0 %400
      %404 = vset.pattern.permute.xlu0 0
      %405 = vperm.xlu0 %404, %v331
      %v406 = vpop.permute.xlu0 %405
      %409 = vset.pattern.permute.xlu0 0
      %410 = vperm.xlu0 %409, %v332
      %v411 = vpop.permute.xlu0 %410
      %414 = vset.pattern.permute.xlu0 0
      %415 = vperm.xlu0 %414, %v333
      %v416 = vpop.permute.xlu0 %415
      %419 = vset.pattern.permute.xlu0 0
      %420 = vperm.xlu0 %419, %v334
      %v421 = vpop.permute.xlu0 %420
      %424 = vset.pattern.permute.xlu0 0
      %425 = vperm.xlu0 %424, %v335
      %v426 = vpop.permute.xlu0 %425
      %429 = vset.pattern.permute.xlu0 0
      %430 = vperm.xlu0 %429, %v336
      %v431 = vpop.permute.xlu0 %430
      %434 = vset.pattern.permute.xlu0 0
      %435 = vperm.xlu0 %434, %v337
      %v436 = vpop.permute.xlu0 %435
      %439 = vset.pattern.permute.xlu0 0
      %440 = vperm.xlu0 %439, %v338
      %v441 = vpop.permute.xlu0 %440
      %444 = vset.pattern.permute.xlu0 0
      %445 = vperm.xlu0 %444, %v339
      %v446 = vpop.permute.xlu0 %445
      %449 = vset.pattern.permute.xlu0 0
      %450 = vperm.xlu0 %449, %v340
      %v451 = vpop.permute.xlu0 %450
      %454 = vset.pattern.permute.xlu0 0
      %455 = vperm.xlu0 %454, %v341
      %v456 = vpop.permute.xlu0 %455
      %459 = vset.pattern.permute.xlu0 0
      %460 = vperm.xlu0 %459, %v342
      %v461 = vpop.permute.xlu0 %460
      %464 = vset.pattern.permute.xlu0 0
      %465 = vperm.xlu0 %464, %v343
      %v466 = vpop.permute.xlu0 %465
      %469 = vset.pattern.permute.xlu0 0
      %470 = vperm.xlu0 %469, %v344
      %v471 = vpop.permute.xlu0 %470
      %474 = vset.pattern.permute.xlu0 0
      %475 = vperm.xlu0 %474, %v345
      %v476 = vpop.permute.xlu0 %475
      %479 = vset.pattern.permute.xlu0 0
      %480 = vperm.xlu0 %479, %v346
      %v481 = vpop.permute.xlu0 %480
      %484 = vset.pattern.permute.xlu0 0
      %485 = vperm.xlu0 %484, %v347
      %v486 = vpop.permute.xlu0 %485
      %489 = vset.pattern.permute.xlu0 0
      %490 = vperm.xlu0 %489, %v348
      %v491 = vpop.permute.xlu0 %490
      %494 = vset.pattern.permute.xlu0 0
      %495 = vperm.xlu0 %494, %v349
      %v496 = vpop.permute.xlu0 %495
      %499 = vset.pattern.permute.xlu0 0
      %500 = vperm.xlu0 %499, %v350
      %v501 = vpop.permute.xlu0 %500
      %504 = vset.pattern.permute.xlu0 0
      %505 = vperm.xlu0 %504, %v351
      %v506 = vpop.permute.xlu0 %505
      %509 = vset.pattern.permute.xlu0 0
      %510 = vperm.xlu0 %509, %v352
      %v511 = vpop.permute.xlu0 %510
      %513 = vmatprep.subr.mxu0 0.0
      %514 = vmatpush1.msra.mxu0 %v225
      %515 = vmatprep.subr.mxu0 0.0
      %516 = vmatpush1.msra.mxu0 %v226
      %517 = vmatprep.subr.mxu0 0.0
      %518 = vmatpush1.msra.mxu0 %v227
      %519 = vmatprep.subr.mxu0 0.0
      %520 = vmatpush1.msra.mxu0 %v228
      %521 = vmatprep.subr.mxu0 0.0
      %522 = vmatpush1.msra.mxu0 %v229
      %523 = vmatprep.subr.mxu0 0.0
      %524 = vmatpush1.msra.mxu0 %v230
      %525 = vmatprep.subr.mxu0 0.0
      %526 = vmatpush1.msra.mxu0 %v231
      %527 = vmatprep.subr.mxu0 0.0
      %528 = vmatpush1.msra.mxu0 %v232
      %529 = vmatprep.subr.mxu0 0.0
      %530 = vmatpush1.msra.mxu0 %v233
      %531 = vmatprep.subr.mxu0 0.0
      %532 = vmatpush1.msra.mxu0 %v234
      %533 = vmatprep.subr.mxu0 0.0
      %534 = vmatpush1.msra.mxu0 %v235
      %535 = vmatprep.subr.mxu0 0.0
      %536 = vmatpush1.msra.mxu0 %v236
      %537 = vmatprep.subr.mxu0 0.0
      %538 = vmatpush1.msra.mxu0 %v237
      %539 = vmatprep.subr.mxu0 0.0
      %540 = vmatpush1.msra.mxu0 %v238
      %541 = vmatprep.subr.mxu0 0.0
      %542 = vmatpush1.msra.mxu0 %v239
      %543 = vmatprep.subr.mxu0 0.0
      %544 = vmatpush1.msra.mxu0 %v240
      %545 = vmatprep.subr.mxu0 0.0
      %546 = vmatpush1.msra.mxu0 %v241
      %547 = vmatprep.subr.mxu0 0.0
      %548 = vmatpush1.msra.mxu0 %v242
      %549 = vmatprep.subr.mxu0 0.0
      %550 = vmatpush1.msra.mxu0 %v243
      %551 = vmatprep.subr.mxu0 0.0
      %552 = vmatpush1.msra.mxu0 %v244
      %553 = vmatprep.subr.mxu0 0.0
      %554 = vmatpush1.msra.mxu0 %v245
      %555 = vmatprep.subr.mxu0 0.0
      %556 = vmatpush1.msra.mxu0 %v246
      %557 = vmatprep.subr.mxu0 0.0
      %558 = vmatpush1.msra.mxu0 %v247
      %559 = vmatprep.subr.mxu0 0.0
      %560 = vmatpush1.msra.mxu0 %v248
      %561 = vmatprep.subr.mxu0 0.0
      %562 = vmatpush1.msra.mxu0 %v249
      %563 = vmatprep.subr.mxu0 0.0
      %564 = vmatpush1.msra.mxu0 %v250
      %565 = vmatprep.subr.mxu0 0.0
      %566 = vmatpush1.msra.mxu0 %v251
      %567 = vmatprep.subr.mxu0 0.0
      %568 = vmatpush1.msra.mxu0 %v252
      %569 = vmatprep.subr.mxu0 0.0
      %570 = vmatpush1.msra.mxu0 %v253
      %571 = vmatprep.subr.mxu0 0.0
      %572 = vmatpush1.msra.mxu0 %v254
      %573 = vmatprep.subr.mxu0 0.0
      %574 = vmatpush1.msra.mxu0 %v255
      %575 = vmatprep.subr.mxu0 0.0
      %576 = vmatpush1.msra.mxu0 %v256
      %577 = vmatprep.mubr.f32.mxu0 %v258
      %578 = vmatmul.mubr.f32.gmra.mrb[0].mxu0 %v257
      %v579 = vpop.f32.mrb[0].mxu0
      %v580 = vadd.f32 %v356, %v579
      %v581 = vpop.f32.mrb[0].mxu0
      %582 = vmatprep.mubr.f32.mxu0 %v260
      %583 = vmatmul.mubr.f32.gmra.mrb[0].mxu0 %v259
      %v584 = vpop.f32.mrb[0].mxu0
      %v585 = vadd.f32 %v361, %v584
      %v586 = vpop.f32.mrb[0].mxu0
      %587 = vmatprep.mubr.f32.mxu0 %v262
      %588 = vmatmul.mubr.f32.gmra.mrb[0].mxu0 %v261
      %v589 = vpop.f32.mrb[0].mxu0
      %v590 = vadd.f32 %v366, %v589
      %v591 = vpop.f32.mrb[0].mxu0
      %592 = vmatprep.mubr.f32.mxu0 %v264
      %593 = vmatmul.mubr.f32.gmra.mrb[0].mxu0 %v263
      %v594 = vpop.f32.mrb[0].mxu0
      %v595 = vadd.f32 %v371, %v594
      %v596 = vpop.f32.mrb[0].mxu0
      %597 = vmatprep.mubr.f32.mxu0 %v266
      %598 = vmatmul.mubr.f32.gmra.mrb[0].mxu0 %v265
      %v599 = vpop.f32.mrb[0].mxu0
      %v600 = vadd.f32 %v376, %v599
      %v601 = vpop.f32.mrb[0].mxu0
      %602 = vmatprep.mubr.f32.mxu0 %v268
      %603 = vmatmul.mubr.f32.gmra.mrb[0].mxu0 %v267
      %v604 = vpop.f32.mrb[0].mxu0
      %v605 = vadd.f32 %v381, %v604
      %v606 = vpop.f32.mrb[0].mxu0
      %607 = vmatprep.mubr.f32.mxu0 %v270
      %608 = vmatmul.mubr.f32.gmra.mrb[0].mxu0 %v269
      %v609 = vpop.f32.mrb[0].mxu0
      %v610 = vadd.f32 %v386, %v609
      %v611 = vpop.f32.mrb[0].mxu0
      %612 = vmatprep.mubr.f32.mxu0 %v272
      %613 = vmatmul.mubr.f32.gmra.mrb[0].mxu0 %v271
      %v614 = vpop.f32.mrb[0].mxu0
      %v615 = vadd.f32 %v391, %v614
      %v616 = vpop.f32.mrb[0].mxu0
      %617 = vmatprep.mubr.f32.mxu0 %v274
      %618 = vmatmul.mubr.f32.gmra.mrb[0].mxu0 %v273
      %v619 = vpop.f32.mrb[0].mxu0
      %v620 = vadd.f32 %v396, %v619
      %v621 = vpop.f32.mrb[0].mxu0
      %622 = vmatprep.mubr.f32.mxu0 %v276
      %623 = vmatmul.mubr.f32.gmra.mrb[0].mxu0 %v275
      %v624 = vpop.f32.mrb[0].mxu0
      %v625 = vadd.f32 %v401, %v624
      %v626 = vpop.f32.mrb[0].mxu0
      %627 = vmatprep.mubr.f32.mxu0 %v278
      %628 = vmatmul.mubr.f32.gmra.mrb[0].mxu0 %v277
      %v629 = vpop.f32.mrb[0].mxu0
      %v630 = vadd.f32 %v406, %v629
      %v631 = vpop.f32.mrb[0].mxu0
      %632 = vmatprep.mubr.f32.mxu0 %v280
      %633 = vmatmul.mubr.f32.gmra.mrb[0].mxu0 %v279
      %v634 = vpop.f32.mrb[0].mxu0
      %v635 = vadd.f32 %v411, %v634
      %v636 = vpop.f32.mrb[0].mxu0
      %637 = vmatprep.mubr.f32.mxu0 %v282
      %638 = vmatmul.mubr.f32.gmra.mrb[0].mxu0 %v281
      %v639 = vpop.f32.mrb[0].mxu0
      %v640 = vadd.f32 %v416, %v639
      %v641 = vpop.f32.mrb[0].mxu0
      %642 = vmatprep.mubr.f32.mxu0 %v284
      %643 = vmatmul.mubr.f32.gmra.mrb[0].mxu0 %v283
      %v644 = vpop.f32.mrb[0].mxu0
      %v645 = vadd.f32 %v421, %v644
      %v646 = vpop.f32.mrb[0].mxu0
      %647 = vmatprep.mubr.f32.mxu0 %v286
      %648 = vmatmul.mubr.f32.gmra.mrb[0].mxu0 %v285
      %v649 = vpop.f32.mrb[0].mxu0
      %v650 = vadd.f32 %v426, %v649
      %v651 = vpop.f32.mrb[0].mxu0
      %652 = vmatprep.mubr.f32.mxu0 %v288
      %653 = vmatmul.mubr.f32.gmra.mrb[0].mxu0 %v287
      %v654 = vpop.f32.mrb[0].mxu0
      %v655 = vadd.f32 %v431, %v654
      %v656 = vpop.f32.mrb[0].mxu0
      %657 = vmatprep.mubr.f32.mxu0 %v290
      %658 = vmatmul.mubr.f32.gmra.mrb[0].mxu0 %v289
      %v659 = vpop.f32.mrb[0].mxu0
      %v660 = vadd.f32 %v436, %v659
      %v661 = vpop.f32.mrb[0].mxu0
      %662 = vmatprep.mubr.f32.mxu0 %v292
      %663 = vmatmul.mubr.f32.gmra.mrb[0].mxu0 %v291
      %v664 = vpop.f32.mrb[0].mxu0
      %v665 = vadd.f32 %v441, %v664
      %v666 = vpop.f32.mrb[0].mxu0
      %667 = vmatprep.mubr.f32.mxu0 %v294
      %668 = vmatmul.mubr.f32.gmra.mrb[0].mxu0 %v293
      %v669 = vpop.f32.mrb[0].mxu0
      %v670 = vadd.f32 %v446, %v669
      %v671 = vpop.f32.mrb[0].mxu0
      %672 = vmatprep.mubr.f32.mxu0 %v296
      %673 = vmatmul.mubr.f32.gmra.mrb[0].mxu0 %v295
      %v674 = vpop.f32.mrb[0].mxu0
      %v675 = vadd.f32 %v451, %v674
      %v676 = vpop.f32.mrb[0].mxu0
      %677 = vmatprep.mubr.f32.mxu0 %v298
      %678 = vmatmul.mubr.f32.gmra.mrb[0].mxu0 %v297
      %v679 = vpop.f32.mrb[0].mxu0
      %v680 = vadd.f32 %v456, %v679
      %v681 = vpop.f32.mrb[0].mxu0
      %682 = vmatprep.mubr.f32.mxu0 %v300
      %683 = vmatmul.mubr.f32.gmra.mrb[0].mxu0 %v299
      %v684 = vpop.f32.mrb[0].mxu0
      %v685 = vadd.f32 %v461, %v684
      %v686 = vpop.f32.mrb[0].mxu0
      %687 = vmatprep.mubr.f32.mxu0 %v302
      %688 = vmatmul.mubr.f32.gmra.mrb[0].mxu0 %v301
      %v689 = vpop.f32.mrb[0].mxu0
      %v690 = vadd.f32 %v466, %v689
      %v691 = vpop.f32.mrb[0].mxu0
      %692 = vmatprep.mubr.f32.mxu0 %v304
      %693 = vmatmul.mubr.f32.gmra.mrb[0].mxu0 %v303
      %v694 = vpop.f32.mrb[0].mxu0
      %v695 = vadd.f32 %v471, %v694
      %v696 = vpop.f32.mrb[0].mxu0
      %697 = vmatprep.mubr.f32.mxu0 %v306
      %698 = vmatmul.mubr.f32.gmra.mrb[0].mxu0 %v305
      %v699 = vpop.f32.mrb[0].mxu0
      %v700 = vadd.f32 %v476, %v699
      %v701 = vpop.f32.mrb[0].mxu0
      %702 = vmatprep.mubr.f32.mxu0 %v308
      %703 = vmatmul.mubr.f32.gmra.mrb[0].mxu0 %v307
      %v704 = vpop.f32.mrb[0].mxu0
      %v705 = vadd.f32 %v481, %v704
      %v706 = vpop.f32.mrb[0].mxu0
      %707 = vmatprep.mubr.f32.mxu0 %v310
      %708 = vmatmul.mubr.f32.gmra.mrb[0].mxu0 %v309
      %v709 = vpop.f32.mrb[0].mxu0
      %v710 = vadd.f32 %v486, %v709
      %v711 = vpop.f32.mrb[0].mxu0
      %712 = vmatprep.mubr.f32.mxu0 %v312
      %713 = vmatmul.mubr.f32.gmra.mrb[0].mxu0 %v311
      %v714 = vpop.f32.mrb[0].mxu0
      %v715 = vadd.f32 %v491, %v714
      %v716 = vpop.f32.mrb[0].mxu0
      %717 = vmatprep.mubr.f32.mxu0 %v314
      %718 = vmatmul.mubr.f32.gmra.mrb[0].mxu0 %v313
      %v719 = vpop.f32.mrb[0].mxu0
      %v720 = vadd.f32 %v496, %v719
      %v721 = vpop.f32.mrb[0].mxu0
      %722 = vmatprep.mubr.f32.mxu0 %v316
      %723 = vmatmul.mubr.f32.gmra.mrb[0].mxu0 %v315
      %v724 = vpop.f32.mrb[0].mxu0
      %v725 = vadd.f32 %v501, %v724
      %v726 = vpop.f32.mrb[0].mxu0
      %727 = vmatprep.mubr.f32.mxu0 %v318
      %728 = vmatmul.mubr.f32.gmra.mrb[0].mxu0 %v317
      %v729 = vpop.f32.mrb[0].mxu0
      %v730 = vadd.f32 %v506, %v729
      %v731 = vpop.f32.mrb[0].mxu0
      %732 = vmatprep.mubr.f32.mxu0 %v320
      %733 = vmatmul.mubr.f32.gmra.mrb[0].mxu0 %v319
      %v734 = vpop.f32.mrb[0].mxu0
      %v735 = vadd.f32 %v511, %v734
      %v736 = vpop.f32.mrb[0].mxu0
      %737 = vdwg.mxu0
      %v738 = vld [vmem:[%s219] sm:$0xff]
      %v739 = vld [vmem:[%s219 + $0x8] sm:$0xff]
      %v740 = vld [vmem:[%s219 + $0x10] sm:$0xff]
      %v741 = vld [vmem:[%s219 + $0x18] sm:$0xff]
      %v742 = vld [vmem:[%s219 + $0x20] sm:$0xff]
      %v743 = vld [vmem:[%s219 + $0x28] sm:$0xff]
      %v744 = vld [vmem:[%s219 + $0x30] sm:$0xff]
      %v745 = vld [vmem:[%s219 + $0x38] sm:$0xff]
      %s746 = scalar_lea.vmem %s219, 64
      %v747 = vld [vmem:[%s746] sm:$0xff]
      %v748 = vld [vmem:[%s746 + $0x8] sm:$0xff]
      %v749 = vld [vmem:[%s746 + $0x10] sm:$0xff]
      %v750 = vld [vmem:[%s746 + $0x18] sm:$0xff]
      %v751 = vld [vmem:[%s746 + $0x20] sm:$0xff]
      %v752 = vld [vmem:[%s746 + $0x28] sm:$0xff]
      %v753 = vld [vmem:[%s746 + $0x30] sm:$0xff]
      %v754 = vld [vmem:[%s746 + $0x38] sm:$0xff]
      %s755 = scalar_lea.vmem %s219, 128
      %v756 = vld [vmem:[%s755] sm:$0xff]
      %v757 = vld [vmem:[%s755 + $0x8] sm:$0xff]
      %v758 = vld [vmem:[%s755 + $0x10] sm:$0xff]
      %v759 = vld [vmem:[%s755 + $0x18] sm:$0xff]
      %v760 = vld [vmem:[%s755 + $0x20] sm:$0xff]
      %v761 = vld [vmem:[%s755 + $0x28] sm:$0xff]
      %v762 = vld [vmem:[%s755 + $0x30] sm:$0xff]
      %v763 = vld [vmem:[%s755 + $0x38] sm:$0xff]
      %s764 = scalar_lea.vmem %s219, 192
      %v765 = vld [vmem:[%s764] sm:$0xff]
      %v766 = vld [vmem:[%s764 + $0x8] sm:$0xff]
      %v767 = vld [vmem:[%s764 + $0x10] sm:$0xff]
      %v768 = vld [vmem:[%s764 + $0x18] sm:$0xff]
      %v769 = vld [vmem:[%s764 + $0x20] sm:$0xff]
      %v770 = vld [vmem:[%s764 + $0x28] sm:$0xff]
      %v771 = vld [vmem:[%s764 + $0x30] sm:$0xff]
      %v772 = vld [vmem:[%s764 + $0x38] sm:$0xff]
      %781 = vrot.lane.b32.xlu0 %v747, 64
      %v782 = vpop.permute.xlu0 %781
      %783 = vrot.lane.b32.xlu0 %v748, 64
      %v784 = vpop.permute.xlu0 %783
      %785 = vrot.lane.b32.xlu0 %v749, 64
      %v786 = vpop.permute.xlu0 %785
      %787 = vrot.lane.b32.xlu0 %v750, 64
      %v788 = vpop.permute.xlu0 %787
      %789 = vrot.lane.b32.xlu0 %v751, 64
      %v790 = vpop.permute.xlu0 %789
      %791 = vrot.lane.b32.xlu0 %v752, 64
      %v792 = vpop.permute.xlu0 %791
      %793 = vrot.lane.b32.xlu0 %v753, 64
      %v794 = vpop.permute.xlu0 %793
      %795 = vrot.lane.b32.xlu0 %v754, 64
      %v796 = vpop.permute.xlu0 %795
      %813 = vrot.lane.b32.xlu0 %v765, 64
      %v814 = vpop.permute.xlu0 %813
      %815 = vrot.lane.b32.xlu0 %v766, 64
      %v816 = vpop.permute.xlu0 %815
      %817 = vrot.lane.b32.xlu0 %v767, 64
      %v818 = vpop.permute.xlu0 %817
      %819 = vrot.lane.b32.xlu0 %v768, 64
      %v820 = vpop.permute.xlu0 %819
      %821 = vrot.lane.b32.xlu0 %v769, 64
      %v822 = vpop.permute.xlu0 %821
      %823 = vrot.lane.b32.xlu0 %v770, 64
      %v824 = vpop.permute.xlu0 %823
      %825 = vrot.lane.b32.xlu0 %v771, 64
      %v826 = vpop.permute.xlu0 %825
      %827 = vrot.lane.b32.xlu0 %v772, 64
      %v828 = vpop.permute.xlu0 %827
      %vm837 = vcmask 523264
      %v838 = vsel %vm837, %v738, %v782
      %v839 = vsel %vm837, %v739, %v784
      %v840 = vsel %vm837, %v740, %v786
      %v841 = vsel %vm837, %v741, %v788
      %v842 = vsel %vm837, %v742, %v790
      %v843 = vsel %vm837, %v743, %v792
      %v844 = vsel %vm837, %v744, %v794
      %v845 = vsel %vm837, %v745, %v796
      %v846 = vsel %vm837, %v756, %v814
      %v847 = vsel %vm837, %v757, %v816
      %v848 = vsel %vm837, %v758, %v818
      %v849 = vsel %vm837, %v759, %v820
      %v850 = vsel %vm837, %v760, %v822
      %v851 = vsel %vm837, %v761, %v824
      %v852 = vsel %vm837, %v762, %v826
      %v853 = vsel %vm837, %v763, %v828
      %v854 = vld [vmem:[%s3] sm:$0xff]
      %v855 = vld [vmem:[%s3 + $0x8] sm:$0xff]
      %v856 = vld [vmem:[%s3 + $0x10] sm:$0xff]
      %v857 = vld [vmem:[%s3 + $0x18] sm:$0xff]
      %v858 = vld [vmem:[%s3 + $0x20] sm:$0xff]
      %v859 = vld [vmem:[%s3 + $0x28] sm:$0xff]
      %v860 = vld [vmem:[%s3 + $0x30] sm:$0xff]
      %v861 = vld [vmem:[%s3 + $0x38] sm:$0xff]
      %v862 = vld [vmem:[%s3 + $0x40] sm:$0xff]
      %v863 = vld [vmem:[%s3 + $0x48] sm:$0xff]
      %v864 = vld [vmem:[%s3 + $0x50] sm:$0xff]
      %v865 = vld [vmem:[%s3 + $0x58] sm:$0xff]
      %v866 = vld [vmem:[%s3 + $0x60] sm:$0xff]
      %v867 = vld [vmem:[%s3 + $0x68] sm:$0xff]
      %v868 = vld [vmem:[%s3 + $0x70] sm:$0xff]
      %v869 = vld [vmem:[%s3 + $0x78] sm:$0xff]
      %v870 = vld [vmem:[%s3 + $0x80] sm:$0xff]
      %v871 = vld [vmem:[%s3 + $0x88] sm:$0xff]
      %v872 = vld [vmem:[%s3 + $0x90] sm:$0xff]
      %v873 = vld [vmem:[%s3 + $0x98] sm:$0xff]
      %v874 = vld [vmem:[%s3 + $0xa0] sm:$0xff]
      %v875 = vld [vmem:[%s3 + $0xa8] sm:$0xff]
      %v876 = vld [vmem:[%s3 + $0xb0] sm:$0xff]
      %v877 = vld [vmem:[%s3 + $0xb8] sm:$0xff]
      %v878 = vld [vmem:[%s3 + $0xc0] sm:$0xff]
      %v879 = vld [vmem:[%s3 + $0xc8] sm:$0xff]
      %v880 = vld [vmem:[%s3 + $0xd0] sm:$0xff]
      %v881 = vld [vmem:[%s3 + $0xd8] sm:$0xff]
      %v882 = vld [vmem:[%s3 + $0xe0] sm:$0xff]
      %v883 = vld [vmem:[%s3 + $0xe8] sm:$0xff]
      %v884 = vld [vmem:[%s3 + $0xf0] sm:$0xff]
      %v885 = vld [vmem:[%s3 + $0xf8] sm:$0xff]
      %v886 = vld [vmem:[%s3 + $0x100] sm:$0xff]
      %v887 = vld [vmem:[%s3 + $0x108] sm:$0xff]
      %v888 = vld [vmem:[%s3 + $0x110] sm:$0xff]
      %v889 = vld [vmem:[%s3 + $0x118] sm:$0xff]
      %v890 = vld [vmem:[%s3 + $0x120] sm:$0xff]
      %v891 = vld [vmem:[%s3 + $0x128] sm:$0xff]
      %v892 = vld [vmem:[%s3 + $0x130] sm:$0xff]
      %v893 = vld [vmem:[%s3 + $0x138] sm:$0xff]
      %v894 = vld [vmem:[%s3 + $0x140] sm:$0xff]
      %v895 = vld [vmem:[%s3 + $0x148] sm:$0xff]
      %v896 = vld [vmem:[%s3 + $0x150] sm:$0xff]
      %v897 = vld [vmem:[%s3 + $0x158] sm:$0xff]
      %v898 = vld [vmem:[%s3 + $0x160] sm:$0xff]
      %v899 = vld [vmem:[%s3 + $0x168] sm:$0xff]
      %v900 = vld [vmem:[%s3 + $0x170] sm:$0xff]
      %v901 = vld [vmem:[%s3 + $0x178] sm:$0xff]
      %v902 = vld [vmem:[%s3 + $0x180] sm:$0xff]
      %v903 = vld [vmem:[%s3 + $0x188] sm:$0xff]
      %v904 = vld [vmem:[%s3 + $0x190] sm:$0xff]
      %v905 = vld [vmem:[%s3 + $0x198] sm:$0xff]
      %v906 = vld [vmem:[%s3 + $0x1a0] sm:$0xff]
      %v907 = vld [vmem:[%s3 + $0x1a8] sm:$0xff]
      %v908 = vld [vmem:[%s3 + $0x1b0] sm:$0xff]
      %v909 = vld [vmem:[%s3 + $0x1b8] sm:$0xff]
      %v910 = vld [vmem:[%s3 + $0x1c0] sm:$0xff]
      %v911 = vld [vmem:[%s3 + $0x1c8] sm:$0xff]
      %v912 = vld [vmem:[%s3 + $0x1d0] sm:$0xff]
      %v913 = vld [vmem:[%s3 + $0x1d8] sm:$0xff]
      %v914 = vld [vmem:[%s3 + $0x1e0] sm:$0xff]
      %v915 = vld [vmem:[%s3 + $0x1e8] sm:$0xff]
      %v916 = vld [vmem:[%s3 + $0x1f0] sm:$0xff]
      %v917 = vld [vmem:[%s3 + $0x1f8] sm:$0xff]
      %v918 = vld [vmem:[%s4] sm:$0x3]
      %v920 = vlaneseq
      %v921 = vshrl.u32 %v920, 7
      %v922 = vsub.s32 0, %v921
      %v923 = vrot.slane %v918, %v922
      %v924 = vlaneseq
      %v925 = vshrl.u32 %v924, 7
      %v926 = vsub.s32 1, %v925
      %v927 = vrot.slane %v918, %v926
      %930 = vmatprep.subr.mxu0 %v855
      %931 = vmatpush1.msra.mxu0 %v854
      %932 = vmatprep.subr.mxu0 %v857
      %933 = vmatpush1.msra.mxu0 %v856
      %934 = vmatprep.subr.mxu0 %v859
      %935 = vmatpush1.msra.mxu0 %v858
      %936 = vmatprep.subr.mxu0 %v861
      %937 = vmatpush1.msra.mxu0 %v860
      %938 = vmatprep.subr.mxu0 %v863
      %939 = vmatpush1.msra.mxu0 %v862
      %940 = vmatprep.subr.mxu0 %v865
      %941 = vmatpush1.msra.mxu0 %v864
      %942 = vmatprep.subr.mxu0 %v867
      %943 = vmatpush1.msra.mxu0 %v866
      %944 = vmatprep.subr.mxu0 %v869
      %945 = vmatpush1.msra.mxu0 %v868
      %946 = vmatprep.subr.mxu0 %v871
      %947 = vmatpush1.msra.mxu0 %v870
      %948 = vmatprep.subr.mxu0 %v873
      %949 = vmatpush1.msra.mxu0 %v872
      %950 = vmatprep.subr.mxu0 %v875
      %951 = vmatpush1.msra.mxu0 %v874
      %952 = vmatprep.subr.mxu0 %v877
      %953 = vmatpush1.msra.mxu0 %v876
      %954 = vmatprep.subr.mxu0 %v879
      %955 = vmatpush1.msra.mxu0 %v878
      %956 = vmatprep.subr.mxu0 %v881
      %957 = vmatpush1.msra.mxu0 %v880
      %958 = vmatprep.subr.mxu0 %v883
      %959 = vmatpush1.msra.mxu0 %v882
      %960 = vmatprep.subr.mxu0 %v885
      %961 = vmatpush1.msra.mxu0 %v884
      %962 = vmatprep.subr.mxu0 %v887
      %963 = vmatpush1.msra.mxu0 %v886
      %964 = vmatprep.subr.mxu0 %v889
      %965 = vmatpush1.msra.mxu0 %v888
      %966 = vmatprep.subr.mxu0 %v891
      %967 = vmatpush1.msra.mxu0 %v890
      %968 = vmatprep.subr.mxu0 %v893
      %969 = vmatpush1.msra.mxu0 %v892
      %970 = vmatprep.subr.mxu0 %v895
      %971 = vmatpush1.msra.mxu0 %v894
      %972 = vmatprep.subr.mxu0 %v897
      %973 = vmatpush1.msra.mxu0 %v896
      %974 = vmatprep.subr.mxu0 %v899
      %975 = vmatpush1.msra.mxu0 %v898
      %976 = vmatprep.subr.mxu0 %v901
      %977 = vmatpush1.msra.mxu0 %v900
      %978 = vmatprep.subr.mxu0 %v903
      %979 = vmatpush1.msra.mxu0 %v902
      %980 = vmatprep.subr.mxu0 %v905
      %981 = vmatpush1.msra.mxu0 %v904
      %982 = vmatprep.subr.mxu0 %v907
      %983 = vmatpush1.msra.mxu0 %v906
      %984 = vmatprep.subr.mxu0 %v909
      %985 = vmatpush1.msra.mxu0 %v908
      %986 = vmatprep.subr.mxu0 %v911
      %987 = vmatpush1.msra.mxu0 %v910
      %988 = vmatprep.subr.mxu0 %v913
      %989 = vmatpush1.msra.mxu0 %v912
      %990 = vmatprep.subr.mxu0 %v915
      %991 = vmatpush1.msra.mxu0 %v914
      %992 = vmatprep.subr.mxu0 %v917
      %993 = vmatpush1.msra.mxu0 %v916
      %994 = vmatprep.mubr.f32.mxu0 %v846
      %995 = vmatmul.mubr.f32.gmra.mrb[0].mxu0 %v838
      %v996 = vpop.f32.mrb[0].mxu0
      %v997 = vadd.f32 %v923, %v996
      %v998 = vpop.f32.mrb[0].mxu0
      %v999 = vadd.f32 %v927, %v998
      %1000 = vmatprep.mubr.f32.mxu0 %v847
      %1001 = vmatmul.mubr.f32.gmra.mrb[0].mxu0 %v839
      %v1002 = vpop.f32.mrb[0].mxu0
      %v1003 = vadd.f32 %v923, %v1002
      %v1004 = vpop.f32.mrb[0].mxu0
      %v1005 = vadd.f32 %v927, %v1004
      %1006 = vmatprep.mubr.f32.mxu0 %v848
      %1007 = vmatmul.mubr.f32.gmra.mrb[0].mxu0 %v840
      %v1008 = vpop.f32.mrb[0].mxu0
      %v1009 = vadd.f32 %v923, %v1008
      %v1010 = vpop.f32.mrb[0].mxu0
      %v1011 = vadd.f32 %v927, %v1010
      %1012 = vmatprep.mubr.f32.mxu0 %v849
      %1013 = vmatmul.mubr.f32.gmra.mrb[0].mxu0 %v841
      %v1014 = vpop.f32.mrb[0].mxu0
      %v1015 = vadd.f32 %v923, %v1014
      %v1016 = vpop.f32.mrb[0].mxu0
      %v1017 = vadd.f32 %v927, %v1016
      %1018 = vmatprep.mubr.f32.mxu0 %v850
      %1019 = vmatmul.mubr.f32.gmra.mrb[0].mxu0 %v842
      %v1020 = vpop.f32.mrb[0].mxu0
      %v1021 = vadd.f32 %v923, %v1020
      %v1022 = vpop.f32.mrb[0].mxu0
      %v1023 = vadd.f32 %v927, %v1022
      %1024 = vmatprep.mubr.f32.mxu0 %v851
      %1025 = vmatmul.mubr.f32.gmra.mrb[0].mxu0 %v843
      %v1026 = vpop.f32.mrb[0].mxu0
      %v1027 = vadd.f32 %v923, %v1026
      %v1028 = vpop.f32.mrb[0].mxu0
      %v1029 = vadd.f32 %v927, %v1028
      %1030 = vmatprep.mubr.f32.mxu0 %v852
      %1031 = vmatmul.mubr.f32.gmra.mrb[0].mxu0 %v844
      %v1032 = vpop.f32.mrb[0].mxu0
      %v1033 = vadd.f32 %v923, %v1032
      %v1034 = vpop.f32.mrb[0].mxu0
      %v1035 = vadd.f32 %v927, %v1034
      %1036 = vmatprep.mubr.f32.mxu0 %v853
      %1037 = vmatmul.mubr.f32.gmra.mrb[0].mxu0 %v845
      %v1038 = vpop.f32.mrb[0].mxu0
      %v1039 = vadd.f32 %v923, %v1038
      %v1040 = vpop.f32.mrb[0].mxu0
      %v1041 = vadd.f32 %v927, %v1040
      %1042 = vdwg.mxu0
      %v1043 = vadd.f32 %v997, %v580
      %v1044 = vadd.f32 %v1003, %v585
      %v1045 = vadd.f32 %v1009, %v590
      %v1046 = vadd.f32 %v1015, %v595
      %v1047 = vadd.f32 %v1021, %v600
      %v1048 = vadd.f32 %v1027, %v605
      %v1049 = vadd.f32 %v1033, %v610
      %v1050 = vadd.f32 %v1039, %v615
      %vm1051 = vcmp.gt.f32.partialorder %v1043, 0.0
      %vm1052 = vcmp.gt.f32.partialorder %v1044, 0.0
      %vm1053 = vcmp.gt.f32.partialorder %v1045, 0.0
      %vm1054 = vcmp.gt.f32.partialorder %v1046, 0.0
      %vm1055 = vcmp.gt.f32.partialorder %v1047, 0.0
      %vm1056 = vcmp.gt.f32.partialorder %v1048, 0.0
      %vm1057 = vcmp.gt.f32.partialorder %v1049, 0.0
      %vm1058 = vcmp.gt.f32.partialorder %v1050, 0.0
      %v1059 = vmul.f32 %v1043, 0.01
      %v1060 = vmul.f32 %v1044, 0.01
      %v1061 = vmul.f32 %v1045, 0.01
      %v1062 = vmul.f32 %v1046, 0.01
      %v1063 = vmul.f32 %v1047, 0.01
      %v1064 = vmul.f32 %v1048, 0.01
      %v1065 = vmul.f32 %v1049, 0.01
      %v1066 = vmul.f32 %v1050, 0.01
      %v1067 = vsel %vm1051, %v1043, %v1059
      %v1068 = vsel %vm1052, %v1044, %v1060
      %v1069 = vsel %vm1053, %v1045, %v1061
      %v1070 = vsel %vm1054, %v1046, %v1062
      %v1071 = vsel %vm1055, %v1047, %v1063
      %v1072 = vsel %vm1056, %v1048, %v1064
      %v1073 = vsel %vm1057, %v1049, %v1065
      %v1074 = vsel %vm1058, %v1050, %v1066
      %v1075 = vadd.f32 %v738, %v1067
      %v1076 = vadd.f32 %v739, %v1068
      %v1077 = vadd.f32 %v740, %v1069
      %v1078 = vadd.f32 %v741, %v1070
      %v1079 = vadd.f32 %v742, %v1071
      %v1080 = vadd.f32 %v743, %v1072
      %v1081 = vadd.f32 %v744, %v1073
      %v1082 = vadd.f32 %v745, %v1074
      %1083 = vst.msk [vmem:[%s224] sm:$0xff] %vm837, %v1075
      %1084 = vst.msk [vmem:[%s224 + $0x8] sm:$0xff] %vm837, %v1076
      %1085 = vst.msk [vmem:[%s224 + $0x10] sm:$0xff] %vm837, %v1077
      %1086 = vst.msk [vmem:[%s224 + $0x18] sm:$0xff] %vm837, %v1078
      %1087 = vst.msk [vmem:[%s224 + $0x20] sm:$0xff] %vm837, %v1079
      %1088 = vst.msk [vmem:[%s224 + $0x28] sm:$0xff] %vm837, %v1080
      %1089 = vst.msk [vmem:[%s224 + $0x30] sm:$0xff] %vm837, %v1081
      %1090 = vst.msk [vmem:[%s224 + $0x38] sm:$0xff] %vm837, %v1082
      %1099 = vrot.lane.b32.xlu0 %v620, 64
      %v1100 = vpop.permute.xlu0 %1099
      %1101 = vrot.lane.b32.xlu0 %v625, 64
      %v1102 = vpop.permute.xlu0 %1101
      %1103 = vrot.lane.b32.xlu0 %v630, 64
      %v1104 = vpop.permute.xlu0 %1103
      %1105 = vrot.lane.b32.xlu0 %v635, 64
      %v1106 = vpop.permute.xlu0 %1105
      %1107 = vrot.lane.b32.xlu0 %v640, 64
      %v1108 = vpop.permute.xlu0 %1107
      %1109 = vrot.lane.b32.xlu0 %v645, 64
      %v1110 = vpop.permute.xlu0 %1109
      %1111 = vrot.lane.b32.xlu0 %v650, 64
      %v1112 = vpop.permute.xlu0 %1111
      %1113 = vrot.lane.b32.xlu0 %v655, 64
      %v1114 = vpop.permute.xlu0 %1113
      %v1123 = vadd.f32 %v997, %v1100
      %v1124 = vadd.f32 %v1003, %v1102
      %v1125 = vadd.f32 %v1009, %v1104
      %v1126 = vadd.f32 %v1015, %v1106
      %v1127 = vadd.f32 %v1021, %v1108
      %v1128 = vadd.f32 %v1027, %v1110
      %v1129 = vadd.f32 %v1033, %v1112
      %v1130 = vadd.f32 %v1039, %v1114
      %vm1131 = vcmp.gt.f32.partialorder %v1123, 0.0
      %vm1132 = vcmp.gt.f32.partialorder %v1124, 0.0
      %vm1133 = vcmp.gt.f32.partialorder %v1125, 0.0
      %vm1134 = vcmp.gt.f32.partialorder %v1126, 0.0
      %vm1135 = vcmp.gt.f32.partialorder %v1127, 0.0
      %vm1136 = vcmp.gt.f32.partialorder %v1128, 0.0
      %vm1137 = vcmp.gt.f32.partialorder %v1129, 0.0
      %vm1138 = vcmp.gt.f32.partialorder %v1130, 0.0
      %v1139 = vmul.f32 %v1123, 0.01
      %v1140 = vmul.f32 %v1124, 0.01
      %v1141 = vmul.f32 %v1125, 0.01
      %v1142 = vmul.f32 %v1126, 0.01
      %v1143 = vmul.f32 %v1127, 0.01
      %v1144 = vmul.f32 %v1128, 0.01
      %v1145 = vmul.f32 %v1129, 0.01
      %v1146 = vmul.f32 %v1130, 0.01
      %v1147 = vsel %vm1131, %v1123, %v1139
      %v1148 = vsel %vm1132, %v1124, %v1140
      %v1149 = vsel %vm1133, %v1125, %v1141
      %v1150 = vsel %vm1134, %v1126, %v1142
      %v1151 = vsel %vm1135, %v1127, %v1143
      %v1152 = vsel %vm1136, %v1128, %v1144
      %v1153 = vsel %vm1137, %v1129, %v1145
      %v1154 = vsel %vm1138, %v1130, %v1146
      %1163 = vrot.lane.b32.xlu0 %v1147, 64
      %v1164 = vpop.permute.xlu0 %1163
      %1165 = vrot.lane.b32.xlu0 %v1148, 64
      %v1166 = vpop.permute.xlu0 %1165
      %1167 = vrot.lane.b32.xlu0 %v1149, 64
      %v1168 = vpop.permute.xlu0 %1167
      %1169 = vrot.lane.b32.xlu0 %v1150, 64
      %v1170 = vpop.permute.xlu0 %1169
      %1171 = vrot.lane.b32.xlu0 %v1151, 64
      %v1172 = vpop.permute.xlu0 %1171
      %1173 = vrot.lane.b32.xlu0 %v1152, 64
      %v1174 = vpop.permute.xlu0 %1173
      %1175 = vrot.lane.b32.xlu0 %v1153, 64
      %v1176 = vpop.permute.xlu0 %1175
      %1177 = vrot.lane.b32.xlu0 %v1154, 64
      %v1178 = vpop.permute.xlu0 %1177
      %v1187 = vadd.f32 %v747, %v1164
      %v1188 = vadd.f32 %v748, %v1166
      %v1189 = vadd.f32 %v749, %v1168
      %v1190 = vadd.f32 %v750, %v1170
      %v1191 = vadd.f32 %v751, %v1172
      %v1192 = vadd.f32 %v752, %v1174
      %v1193 = vadd.f32 %v753, %v1176
      %v1194 = vadd.f32 %v754, %v1178
      %s1195 = scalar_lea.vmem %s224, 64
      %1196 = vst.msk [vmem:[%s1195] sm:$0xff] %vm837, %v1187
      %1197 = vst.msk [vmem:[%s1195 + $0x8] sm:$0xff] %vm837, %v1188
      %1198 = vst.msk [vmem:[%s1195 + $0x10] sm:$0xff] %vm837, %v1189
      %1199 = vst.msk [vmem:[%s1195 + $0x18] sm:$0xff] %vm837, %v1190
      %1200 = vst.msk [vmem:[%s1195 + $0x20] sm:$0xff] %vm837, %v1191
      %1201 = vst.msk [vmem:[%s1195 + $0x28] sm:$0xff] %vm837, %v1192
      %1202 = vst.msk [vmem:[%s1195 + $0x30] sm:$0xff] %vm837, %v1193
      %1203 = vst.msk [vmem:[%s1195 + $0x38] sm:$0xff] %vm837, %v1194
      %v1204 = vadd.f32 %v999, %v660
      %v1205 = vadd.f32 %v1005, %v665
      %v1206 = vadd.f32 %v1011, %v670
      %v1207 = vadd.f32 %v1017, %v675
      %v1208 = vadd.f32 %v1023, %v680
      %v1209 = vadd.f32 %v1029, %v685
      %v1210 = vadd.f32 %v1035, %v690
      %v1211 = vadd.f32 %v1041, %v695
      %vm1212 = vcmp.gt.f32.partialorder %v1204, 0.0
      %vm1213 = vcmp.gt.f32.partialorder %v1205, 0.0
      %vm1214 = vcmp.gt.f32.partialorder %v1206, 0.0
      %vm1215 = vcmp.gt.f32.partialorder %v1207, 0.0
      %vm1216 = vcmp.gt.f32.partialorder %v1208, 0.0
      %vm1217 = vcmp.gt.f32.partialorder %v1209, 0.0
      %vm1218 = vcmp.gt.f32.partialorder %v1210, 0.0
      %vm1219 = vcmp.gt.f32.partialorder %v1211, 0.0
      %v1220 = vmul.f32 %v1204, 0.01
      %v1221 = vmul.f32 %v1205, 0.01
      %v1222 = vmul.f32 %v1206, 0.01
      %v1223 = vmul.f32 %v1207, 0.01
      %v1224 = vmul.f32 %v1208, 0.01
      %v1225 = vmul.f32 %v1209, 0.01
      %v1226 = vmul.f32 %v1210, 0.01
      %v1227 = vmul.f32 %v1211, 0.01
      %v1228 = vsel %vm1212, %v1204, %v1220
      %v1229 = vsel %vm1213, %v1205, %v1221
      %v1230 = vsel %vm1214, %v1206, %v1222
      %v1231 = vsel %vm1215, %v1207, %v1223
      %v1232 = vsel %vm1216, %v1208, %v1224
      %v1233 = vsel %vm1217, %v1209, %v1225
      %v1234 = vsel %vm1218, %v1210, %v1226
      %v1235 = vsel %vm1219, %v1211, %v1227
      %v1236 = vadd.f32 %v756, %v1228
      %v1237 = vadd.f32 %v757, %v1229
      %v1238 = vadd.f32 %v758, %v1230
      %v1239 = vadd.f32 %v759, %v1231
      %v1240 = vadd.f32 %v760, %v1232
      %v1241 = vadd.f32 %v761, %v1233
      %v1242 = vadd.f32 %v762, %v1234
      %v1243 = vadd.f32 %v763, %v1235
      %s1244 = scalar_lea.vmem %s224, 128
      %1245 = vst.msk [vmem:[%s1244] sm:$0xff] %vm837, %v1236
      %1246 = vst.msk [vmem:[%s1244 + $0x8] sm:$0xff] %vm837, %v1237
      %1247 = vst.msk [vmem:[%s1244 + $0x10] sm:$0xff] %vm837, %v1238
      %1248 = vst.msk [vmem:[%s1244 + $0x18] sm:$0xff] %vm837, %v1239
      %1249 = vst.msk [vmem:[%s1244 + $0x20] sm:$0xff] %vm837, %v1240
      %1250 = vst.msk [vmem:[%s1244 + $0x28] sm:$0xff] %vm837, %v1241
      %1251 = vst.msk [vmem:[%s1244 + $0x30] sm:$0xff] %vm837, %v1242
      %1252 = vst.msk [vmem:[%s1244 + $0x38] sm:$0xff] %vm837, %v1243
      %1261 = vrot.lane.b32.xlu0 %v700, 64
      %v1262 = vpop.permute.xlu0 %1261
      %1263 = vrot.lane.b32.xlu0 %v705, 64
      %v1264 = vpop.permute.xlu0 %1263
      %1265 = vrot.lane.b32.xlu0 %v710, 64
      %v1266 = vpop.permute.xlu0 %1265
      %1267 = vrot.lane.b32.xlu0 %v715, 64
      %v1268 = vpop.permute.xlu0 %1267
      %1269 = vrot.lane.b32.xlu0 %v720, 64
      %v1270 = vpop.permute.xlu0 %1269
      %1271 = vrot.lane.b32.xlu0 %v725, 64
      %v1272 = vpop.permute.xlu0 %1271
      %1273 = vrot.lane.b32.xlu0 %v730, 64
      %v1274 = vpop.permute.xlu0 %1273
      %1275 = vrot.lane.b32.xlu0 %v735, 64
      %v1276 = vpop.permute.xlu0 %1275
      %v1285 = vadd.f32 %v999, %v1262
      %v1286 = vadd.f32 %v1005, %v1264
      %v1287 = vadd.f32 %v1011, %v1266
      %v1288 = vadd.f32 %v1017, %v1268
      %v1289 = vadd.f32 %v1023, %v1270
      %v1290 = vadd.f32 %v1029, %v1272
      %v1291 = vadd.f32 %v1035, %v1274
      %v1292 = vadd.f32 %v1041, %v1276
      %vm1293 = vcmp.gt.f32.partialorder %v1285, 0.0
      %vm1294 = vcmp.gt.f32.partialorder %v1286, 0.0
      %vm1295 = vcmp.gt.f32.partialorder %v1287, 0.0
      %vm1296 = vcmp.gt.f32.partialorder %v1288, 0.0
      %vm1297 = vcmp.gt.f32.partialorder %v1289, 0.0
      %vm1298 = vcmp.gt.f32.partialorder %v1290, 0.0
      %vm1299 = vcmp.gt.f32.partialorder %v1291, 0.0
      %vm1300 = vcmp.gt.f32.partialorder %v1292, 0.0
      %v1301 = vmul.f32 %v1285, 0.01
      %v1302 = vmul.f32 %v1286, 0.01
      %v1303 = vmul.f32 %v1287, 0.01
      %v1304 = vmul.f32 %v1288, 0.01
      %v1305 = vmul.f32 %v1289, 0.01
      %v1306 = vmul.f32 %v1290, 0.01
      %v1307 = vmul.f32 %v1291, 0.01
      %v1308 = vmul.f32 %v1292, 0.01
      %v1309 = vsel %vm1293, %v1285, %v1301
      %v1310 = vsel %vm1294, %v1286, %v1302
      %v1311 = vsel %vm1295, %v1287, %v1303
      %v1312 = vsel %vm1296, %v1288, %v1304
      %v1313 = vsel %vm1297, %v1289, %v1305
      %v1314 = vsel %vm1298, %v1290, %v1306
      %v1315 = vsel %vm1299, %v1291, %v1307
      %v1316 = vsel %vm1300, %v1292, %v1308
      %1325 = vrot.lane.b32.xlu0 %v1309, 64
      %v1326 = vpop.permute.xlu0 %1325
      %1327 = vrot.lane.b32.xlu0 %v1310, 64
      %v1328 = vpop.permute.xlu0 %1327
      %1329 = vrot.lane.b32.xlu0 %v1311, 64
      %v1330 = vpop.permute.xlu0 %1329
      %1331 = vrot.lane.b32.xlu0 %v1312, 64
      %v1332 = vpop.permute.xlu0 %1331
      %1333 = vrot.lane.b32.xlu0 %v1313, 64
      %v1334 = vpop.permute.xlu0 %1333
      %1335 = vrot.lane.b32.xlu0 %v1314, 64
      %v1336 = vpop.permute.xlu0 %1335
      %1337 = vrot.lane.b32.xlu0 %v1315, 64
      %v1338 = vpop.permute.xlu0 %1337
      %1339 = vrot.lane.b32.xlu0 %v1316, 64
      %v1340 = vpop.permute.xlu0 %1339
      %v1349 = vadd.f32 %v765, %v1326
      %v1350 = vadd.f32 %v766, %v1328
      %v1351 = vadd.f32 %v767, %v1330
      %v1352 = vadd.f32 %v768, %v1332
      %v1353 = vadd.f32 %v769, %v1334
      %v1354 = vadd.f32 %v770, %v1336
      %v1355 = vadd.f32 %v771, %v1338
      %v1356 = vadd.f32 %v772, %v1340
      %s1357 = scalar_lea.vmem %s224, 192
      %1358 = vst.msk [vmem:[%s1357] sm:$0xff] %vm837, %v1349
      %1359 = vst.msk [vmem:[%s1357 + $0x8] sm:$0xff] %vm837, %v1350
      %1360 = vst.msk [vmem:[%s1357 + $0x10] sm:$0xff] %vm837, %v1351
      %1361 = vst.msk [vmem:[%s1357 + $0x18] sm:$0xff] %vm837, %v1352
      %1362 = vst.msk [vmem:[%s1357 + $0x20] sm:$0xff] %vm837, %v1353
      %1363 = vst.msk [vmem:[%s1357 + $0x28] sm:$0xff] %vm837, %v1354
      %1364 = vst.msk [vmem:[%s1357 + $0x30] sm:$0xff] %vm837, %v1355
      %1365 = vst.msk [vmem:[%s1357 + $0x38] sm:$0xff] %vm837, %v1356
      %p1366 = scmp.lt.s32.totalorder %s16, 1
      %s1367 = scalar_select %p1366, %s16, 1
      %s1368 = smul.addr %s1367, 32
      %s1369 = smul.addr %s1368, 8
      %s1370 = scalar_lea.vmem %s5, %s1369
      // Predicated region
      $region41: #{block3d_forward.1} parent=39 // pred_check
        %p1371 = pneg %p144
      $region42: #{block3d_forward.1} parent=39 // pred_check_branch
        %1373 = sbr.rel (%p1371) target = $region44
      $region43: #{block3d_forward.1} parent=39 // pred_region
        _
      $region44: #{block3d_forward.1} parent=39 // pred_fallthru
        _
    $region40: #{block3d_forward.1} parent=5 // pred_fallthru
      _
    %p1374 = scmp.le.s32.totalorder 2, %s11
    // Predicated region
    $region45: #{block3d_forward.1} parent=5 // pred_check
      %p1375 = pneg %p1374
    $region46: #{block3d_forward.1} parent=5 // pred_check_branch
      %1377 = sbr.rel (%p1375) target = $region48
    $region47: #{block3d_forward.1} parent=5 // pred_region
      %s1378 = ssub.s32 %s11, 2
      // Predicated region
      $region49: #{block3d_forward.1} parent=47 // pred_check
        %p1379 = pneg %p150
      $region50: #{block3d_forward.1} parent=47 // pred_check_branch
        %1381 = sbr.rel (%p1379) target = $region52
      $region51: #{block3d_forward.1} parent=47 // pred_region
        %p1382 = scmp.lt.s32.totalorder %s17, 1
        %s1383 = scalar_select %p1382, %s17, 1
        %s1384 = smul.addr %s1383, 32
        %s1385 = smul.addr %s1384, 8
        %s1386 = scalar_lea.vmem %s5, %s1385
      $region52: #{block3d_forward.1} parent=47 // pred_fallthru
        _
    $region48: #{block3d_forward.1} parent=5 // pred_fallthru
      _
  $region6: #{block3d_forward.1} parent=0 // loop_footer
    %s15 = sadd.s32 1, %s11
  $region7: #{block3d_forward.1} parent=0 // loop_footer_branch
    %10 = sbr.rel target = $region3
  $region8: #{block3d_forward.1} parent=0 // loop_exit
    _

</llo_original>
